<compile_context>
chip_gen: v6e
topology: v6e:2x2x1
jax: 0.10.0
libtpu: 0.0.40
codegen_flags: <defaults>
</compile_context>

<pallas_src>
import jax
import jax.numpy as jnp
from jax.experimental import pallas as pl
from jax.experimental.pallas import tpu as pltpu

LN_EPS = 1e-7            # layer_norm_eps from the module default (1e-07)


def _layernorm(x, gamma, beta, eps=LN_EPS):
    mu = jnp.mean(x, axis=-1, keepdims=True)
    var = jnp.mean((x - mu) ** 2, axis=-1, keepdims=True)
    return (x - mu) * jax.lax.rsqrt(var + eps) * gamma + beta


def _ffn_chunk(F):
    """Largest 128-multiple divisor of F (<=512) for the FFN F-tiling."""
    for fc in (512, 384, 256, 128):
        if F % fc == 0:
            return fc
    # TODO(synk): F with no 128-multiple divisor falls back to a single chunk
    # (full (rows, F) intermediate); BERT-style F (3072/4096) never hits this.
    return F


def _choose_tb(B, S):
    """Batch rows per grid step: multiple of 8 (sublane tiling of the (tb,1)
    pooled output), capped so (tb,S,S) f32 scores+probs stay ~<=16 MiB, and
    preferring >=2 grid steps so both v7x TensorCores get work."""
    if B % 8 != 0:
        return B                       # toy / ragged batch: single block
    row_cap = max(8, ((16 * 1024 * 1024) // max(1, 8 * S * S)) // 8 * 8)
    tb = 8
    for cand in (16, 32, 64):
        if B % cand == 0 and cand <= row_cap and B // cand >= 2:
            tb = cand
    return tb


def _vmem_limit_bytes():
    """~85% of physical VMEM, capped at 100 MiB: ~54 MiB on v7x (64 MiB/TC),
    ~100 MiB on v5e/v6e (128 MiB)."""
    try:
        cap = int(pltpu.get_tpu_info().vmem_capacity_bytes)
    except Exception:
        cap = 64 * 1024 * 1024         # conservative (v7x-sized) fallback
    return min(100 * 1024 * 1024, int(cap * 0.85))


def _const_spec(shape):
    """Constant-index-map operand (weights / biases): single-buffered so the
    pipeline does not allocate a useless second VMEM copy."""
    index_map = lambda b: (0,) * len(shape)
    try:
        return pl.BlockSpec(shape, index_map, pipeline_mode=pl.Buffered(1))
    except Exception:                  # BlockSpec without pipeline_mode support
        return pl.BlockSpec(shape, index_map)


# ----------------------------------------------------------------------------
# Fused kernel: encoder layer + AttentionHead pooling + regressor.
# ----------------------------------------------------------------------------
def fused_encoder_pool_kernel(
        h_ref, mask_ref,
        wqkv_ref, bqkv_ref, wo_ref, bo_ref, g1_ref, be1_ref,
        w1c_ref, bb1c_ref, w2c_ref, bb2_ref, g2_ref, be2_ref,
        attw_ref, attb_ref, attv_ref, attvb_ref, regw_ref, regb_ref,
        out_ref, ffn_acc):
    tb, S, D = h_ref.shape
    n_chunks = w1c_ref.shape[0]
    rows = tb * S

    h_bf3 = h_ref[...]                                   # (tb,S,D) bf16
    # Leading-dim merges/splits keep the lane (D) dim untouched -> layout-free.
    h_bf = h_bf3.reshape(rows, D)
    h_f32 = h_bf3.astype(jnp.float32).reshape(rows, D)   # residual path (f32)

    # ---- self-attention -----------------------------------------------------
    # Fused QKV projection (1/sqrt(D) pre-folded into Wq/bq); cast the slab to
    # bf16 immediately so only the bf16 copy stays live.
    qkv = (jnp.dot(h_bf, wqkv_ref[...], preferred_element_type=jnp.float32)
           + bqkv_ref[...]).astype(jnp.bfloat16)          # (rows, 3D)
    q = qkv[:, 0 * D:1 * D].reshape(tb, S, D)
    k = qkv[:, 1 * D:2 * D].reshape(tb, S, D)
    v = qkv[:, 2 * D:3 * D].reshape(tb, S, D)

    scores = jax.lax.dot_general(                         # (tb, Sq, Sk) f32
        q, k, dimension_numbers=(((2,), (2,)), ((0,), (0,))),
        preferred_element_type=jnp.float32)
    scores = scores + mask_ref[...]                       # additive key mask
    scores = scores - jnp.max(scores, axis=-1, keepdims=True)
    p = jnp.exp(scores)
    p = p * pl.reciprocal(jnp.sum(p, axis=-1, keepdims=True), approx=True)

    ctx = jax.lax.dot_general(                            # (tb, S, D) f32
        p.astype(jnp.bfloat16), v,
        dimension_numbers=(((2,), (1,)), ((0,), (0,))),
        preferred_element_type=jnp.float32)
    attn_out = jnp.dot(ctx.reshape(rows, D).astype(jnp.bfloat16), wo_ref[...],
                       preferred_element_type=jnp.float32) + bo_ref[...]

    h1 = _layernorm(h_f32 + attn_out, g1_ref[...], be1_ref[...])   # (rows, D)
    h1_bf = h1.astype(jnp.bfloat16)

    # ---- FFN: F-chunked, leading-dim indexed weight chunks, scratch acc -----
    ffn_acc[...] = jnp.zeros_like(ffn_acc)

    def ffn_step(c, carry):
        mid = (jnp.dot(h1_bf, w1c_ref[c], preferred_element_type=jnp.float32)
               + bb1c_ref[c])
        # TODO(synk): PyTorch nn.GELU default is exact erf; tanh approximation
        # kept for guaranteed Mosaic lowering (~1e-3-level divergence).
        mid = jax.nn.gelu(mid, approximate=True)
        ffn_acc[...] += jnp.dot(mid.astype(jnp.bfloat16), w2c_ref[c],
                                preferred_element_type=jnp.float32)
        return carry

    jax.lax.fori_loop(0, n_chunks, ffn_step, 0,
                      unroll=True if n_chunks <= 8 else 8)

    hs = _layernorm(h1 + ffn_acc[...] + bb2_ref[...], g2_ref[...], be2_ref[...])
    hs3 = hs.reshape(tb, S, D)                            # last_hidden_state

    # ---- AttentionHead + regressor epilogue (fused: no HBM round trip) ------
    att = jnp.tanh(jnp.dot(hs.astype(jnp.bfloat16), attw_ref[...],
                           preferred_element_type=jnp.float32) + attb_ref[...])
    # V / regressor have output width 1: VPU multiply + lane reduction instead
    # of N=1 MXU matmuls.
    score = jnp.sum(att * attv_ref[...], axis=-1, keepdims=True) + attvb_ref[...]
    score = score.reshape(tb, S, 1)
    # NOTE: matches the PyTorch AttentionHead: the pooling softmax is NOT masked.
    score = score - jnp.max(score, axis=1, keepdims=True)
    w = jnp.exp(score)
    w = w / jnp.sum(w, axis=1, keepdims=True)             # exact divide (parity)
    context = jnp.sum(w * hs3, axis=1)                    # (tb, D) f32
    out_ref[...] = (jnp.sum(context * regw_ref[...], axis=-1, keepdims=True)
                    + regb_ref[...])                      # (tb, 1)


def transformer_forward_kernel(h_bf16, add_mask, prep):
    B, S, D = h_bf16.shape
    n_chunks, _, fc = prep["w1c"].shape
    F = n_chunks * fc
    H = prep["att_w"].shape[1]
    tb = _choose_tb(B, S)
    rows = tb * S

    in_specs = [
        pl.BlockSpec((tb, S, D), lambda b: (b, 0, 0)),        # hidden (bf16)
        pl.BlockSpec((tb, 1, S), lambda b: (b, 0, 0)),        # additive key mask
        _const_spec((D, 3 * D)), _const_spec((1, 3 * D)),     # fused Wqkv, bqkv
        _const_spec((D, D)), _const_spec((1, D)),             # Wo, bo
        _const_spec((1, D)), _const_spec((1, D)),             # LN1 gamma, beta
        _const_spec((n_chunks, D, fc)), _const_spec((n_chunks, 1, fc)),  # W1, b1 chunks
        _const_spec((n_chunks, fc, D)), _const_spec((1, D)),  # W2 chunks, b2
        _const_spec((1, D)), _const_spec((1, D)),             # LN2 gamma, beta
        _const_spec((D, H)), _const_spec((1, H)),             # AttentionHead W, b
        _const_spec((1, H)), _const_spec((1, 1)),             # AttentionHead V row, bias
        _const_spec((1, D)), _const_spec((1, 1)),             # regressor row, bias
    ]

    flops = 2 * B * S * (3 * D * D + 2 * S * D + D * D + 2 * D * F + D * H + H + D)
    transcendentals = B * S * (S + F + H)
    weight_keys = ("wqkv", "bqkv", "wo", "bo", "g1", "be1", "w1c", "bb1c",
                   "w2c", "bb2", "g2", "be2", "att_w", "att_b", "att_v",
                   "att_vb", "reg_w", "reg_b")
    bytes_accessed = (h_bf16.size * 2 + add_mask.size * 4 + B * 4
                      + sum(int(prep[k].size) * prep[k].dtype.itemsize
                            for k in weight_keys))

    return pl.pallas_call(
        fused_encoder_pool_kernel,
        out_shape=jax.ShapeDtypeStruct((B, 1), jnp.float32),
        grid=(B // tb,),
        in_specs=in_specs,
        out_specs=pl.BlockSpec((tb, 1), lambda b: (b, 0)),
        scratch_shapes=[pltpu.VMEM((rows, D), jnp.float32)],  # FFN accumulator
        compiler_params=pltpu.CompilerParams(
            dimension_semantics=("parallel",),
            vmem_limit_bytes=_vmem_limit_bytes(),
        ),
        cost_estimate=pl.CostEstimate(
            flops=int(flops),
            transcendentals=int(transcendentals),
            bytes_accessed=int(bytes_accessed)),
    )(h_bf16, add_mask,
      prep["wqkv"], prep["bqkv"], prep["wo"], prep["bo"],
      prep["g1"], prep["be1"],
      prep["w1c"], prep["bb1c"], prep["w2c"], prep["bb2"],
      prep["g2"], prep["be2"],
      prep["att_w"], prep["att_b"], prep["att_v"], prep["att_vb"],
      prep["reg_w"], prep["reg_b"])


# ----------------------------------------------------------------------------
# Parameter init (deterministic), one-time weight preparation, full forward.
# ----------------------------------------------------------------------------
def init_params(key, vocab, max_seq, d_model, d_ffn, attn_hidden):
    ks = jax.random.split(key, 16)
    n = lambda k, shape: (0.02 * jax.random.normal(k, shape)).astype(jnp.float32)
    ones = lambda shape: jnp.ones(shape, jnp.float32)
    zeros = lambda shape: jnp.zeros(shape, jnp.float32)
    return {
        # embeddings
        "tok_emb": n(ks[0], (vocab, d_model)),
        "pos_emb": n(ks[1], (max_seq, d_model)),
        "emb_g": ones((1, d_model)), "emb_b": zeros((1, d_model)),
        # encoder layer
        "wq": n(ks[2], (d_model, d_model)), "bq": zeros((1, d_model)),
        "wk": n(ks[3], (d_model, d_model)), "bk": zeros((1, d_model)),
        "wv": n(ks[4], (d_model, d_model)), "bv": zeros((1, d_model)),
        "wo": n(ks[5], (d_model, d_model)), "bo": zeros((1, d_model)),
        "g1": ones((1, d_model)), "be1": zeros((1, d_model)),
        "w1": n(ks[6], (d_model, d_ffn)), "bb1": zeros((1, d_ffn)),
        "w2": n(ks[7], (d_ffn, d_model)), "bb2": zeros((1, d_model)),
        "g2": ones((1, d_model)), "be2": zeros((1, d_model)),
        # attention head + regressor
        "att_w": n(ks[8], (d_model, attn_hidden)), "att_b": zeros((1, attn_hidden)),
        "att_v": n(ks[9], (attn_hidden, 1)), "att_vb": zeros((1, 1)),
        "reg_w": n(ks[10], (d_model, 1)), "reg_b": zeros((1, 1)),
    }


def prepare_params(params):
    """One-time (outside jit) weight prep: QKV fusion + 1/sqrt(D) fold, bf16
    casts for MXU operands, F-chunked FFN weights for the in-kernel loop."""
    D = params["wq"].shape[0]
    F = params["w1"].shape[1]
    fc = _ffn_chunk(F)
    nc = F // fc
    scale = 1.0 / (float(D) ** 0.5)
    wqkv = jnp.concatenate([params["wq"] * scale, params["wk"], params["wv"]],
                           axis=1).astype(jnp.bfloat16)
    bqkv = jnp.concatenate([params["bq"] * scale, params["bk"], params["bv"]],
                           axis=1).astype(jnp.float32)
    w1c = jnp.transpose(params["w1"].reshape(D, nc, fc), (1, 0, 2)).astype(jnp.bfloat16)
    bb1c = jnp.transpose(params["bb1"].reshape(1, nc, fc), (1, 0, 2))       # (nc,1,fc)
    w2c = params["w2"].reshape(nc, fc, D).astype(jnp.bfloat16)
    return {
        "tok_emb": params["tok_emb"], "pos_emb": params["pos_emb"],
        "emb_g": params["emb_g"], "emb_b": params["emb_b"],
        "wqkv": wqkv, "bqkv": bqkv,
        "wo": params["wo"].astype(jnp.bfloat16), "bo": params["bo"],
        "g1": params["g1"], "be1": params["be1"],
        "w1c": w1c, "bb1c": bb1c, "w2c": w2c, "bb2": params["bb2"],
        "g2": params["g2"], "be2": params["be2"],
        "att_w": params["att_w"].astype(jnp.bfloat16), "att_b": params["att_b"],
        "att_v": params["att_v"].T.astype(jnp.float32), "att_vb": params["att_vb"],
        "reg_w": params["reg_w"].T.astype(jnp.float32), "reg_b": params["reg_b"],
    }


@jax.jit
def forward(input_ids, attention_mask, prep):
    B, S = input_ids.shape
    # --- glue: embedding gathers + embedding LayerNorm (no clean Pallas gather) ---
    h = prep["tok_emb"][input_ids] + prep["pos_emb"][None, :S, :]
    h = _layernorm(h, prep["emb_g"], prep["emb_b"])
    # additive key mask, shape (B, 1, S): 0 where valid, -1e9 where padded (f32)
    add_mask = ((1.0 - attention_mask.astype(jnp.float32)) * -1e9)[:, None, :]
    # --- fused Pallas kernel: encoder layer + AttentionHead + regressor ---
    return transformer_forward_kernel(h.astype(jnp.bfloat16), add_mask, prep)


if __name__ == "__main__":
    B, S, D, F, H, VOCAB = 2, 8, 32, 128, 32, 100
    # NOTE: toy shapes (D=32, S=8) under-fill (8,128) vregs / MXU tiles; use
    # 128/256-multiple D/F/H and a batch multiple of 16 for real throughput.

    key = jax.random.PRNGKey(0)
    k_param, k_ids = jax.random.split(key)
    params = init_params(k_param, VOCAB, S, D, F, H)
    prep = prepare_params(params)

    input_ids = jax.random.randint(k_ids, (B, S), 0, VOCAB, dtype=jnp.int32)
    attention_mask = jnp.ones((B, S), jnp.int32).at[1, 6:].set(0)

    out = forward(input_ids, attention_mask, prep)
    out = jax.block_until_ready(out)
    assert out.shape == (B, 1)
    assert bool(jnp.all(jnp.isfinite(out)))
    print("KERNEL_OK")
</pallas_src>

<mosaic_0001>
module attributes {stable_mosaic.version = 11 : i64} {
  func.func @fused_encoder_pool_kernel(%arg0: i32, %arg1: memref<2x8x32xbf16, #tpu.memory_space<vmem>>, %arg2: memref<2x1x8xf32, #tpu.memory_space<vmem>>, %arg3: memref<32x96xbf16, #tpu.memory_space<vmem>>, %arg4: memref<1x96xf32, #tpu.memory_space<vmem>>, %arg5: memref<32x32xbf16, #tpu.memory_space<vmem>>, %arg6: memref<1x32xf32, #tpu.memory_space<vmem>>, %arg7: memref<1x32xf32, #tpu.memory_space<vmem>>, %arg8: memref<1x32xf32, #tpu.memory_space<vmem>>, %arg9: memref<1x32x128xbf16, #tpu.memory_space<vmem>>, %arg10: memref<1x1x128xf32, #tpu.memory_space<vmem>>, %arg11: memref<1x128x32xbf16, #tpu.memory_space<vmem>>, %arg12: memref<1x32xf32, #tpu.memory_space<vmem>>, %arg13: memref<1x32xf32, #tpu.memory_space<vmem>>, %arg14: memref<1x32xf32, #tpu.memory_space<vmem>>, %arg15: memref<32x32xbf16, #tpu.memory_space<vmem>>, %arg16: memref<1x32xf32, #tpu.memory_space<vmem>>, %arg17: memref<1x32xf32, #tpu.memory_space<vmem>>, %arg18: memref<1x1xf32, #tpu.memory_space<vmem>>, %arg19: memref<1x32xf32, #tpu.memory_space<vmem>>, %arg20: memref<1x1xf32, #tpu.memory_space<vmem>>, %arg21: memref<2x1xf32, #tpu.memory_space<vmem>>, %arg22: memref<16x32xf32, #tpu.memory_space<vmem>>) attributes {dimension_semantics = [#tpu.dimension_semantics<parallel>], iteration_bounds = array<i64: 1>, scalar_prefetch = 0 : i64, scratch_operands = 1 : i64, tpu.core_type = #tpu.core_type<tc>, window_params = [{transform_indices = @transform_0, window_bounds = array<i64: 2, 8, 32>}, {transform_indices = @transform_1, window_bounds = array<i64: 2, 1, 8>}, {pipeline_mode = #tpu.pipeline_mode<synchronous>, transform_indices = @transform_2, window_bounds = array<i64: 32, 96>}, {pipeline_mode = #tpu.pipeline_mode<synchronous>, transform_indices = @transform_3, window_bounds = array<i64: 1, 96>}, {pipeline_mode = #tpu.pipeline_mode<synchronous>, transform_indices = @transform_4, window_bounds = array<i64: 32, 32>}, {pipeline_mode = #tpu.pipeline_mode<synchronous>, transform_indices = @transform_5, window_bounds = array<i64: 1, 32>}, {pipeline_mode = #tpu.pipeline_mode<synchronous>, transform_indices = @transform_6, window_bounds = array<i64: 1, 32>}, {pipeline_mode = #tpu.pipeline_mode<synchronous>, transform_indices = @transform_7, window_bounds = array<i64: 1, 32>}, {pipeline_mode = #tpu.pipeline_mode<synchronous>, transform_indices = @transform_8, window_bounds = array<i64: 1, 32, 128>}, {pipeline_mode = #tpu.pipeline_mode<synchronous>, transform_indices = @transform_9, window_bounds = array<i64: 1, 1, 128>}, {pipeline_mode = #tpu.pipeline_mode<synchronous>, transform_indices = @transform_10, window_bounds = array<i64: 1, 128, 32>}, {pipeline_mode = #tpu.pipeline_mode<synchronous>, transform_indices = @transform_11, window_bounds = array<i64: 1, 32>}, {pipeline_mode = #tpu.pipeline_mode<synchronous>, transform_indices = @transform_12, window_bounds = array<i64: 1, 32>}, {pipeline_mode = #tpu.pipeline_mode<synchronous>, transform_indices = @transform_13, window_bounds = array<i64: 1, 32>}, {pipeline_mode = #tpu.pipeline_mode<synchronous>, transform_indices = @transform_14, window_bounds = array<i64: 32, 32>}, {pipeline_mode = #tpu.pipeline_mode<synchronous>, transform_indices = @transform_15, window_bounds = array<i64: 1, 32>}, {pipeline_mode = #tpu.pipeline_mode<synchronous>, transform_indices = @transform_16, window_bounds = array<i64: 1, 32>}, {pipeline_mode = #tpu.pipeline_mode<synchronous>, transform_indices = @transform_17, window_bounds = array<i64: 1, 1>}, {pipeline_mode = #tpu.pipeline_mode<synchronous>, transform_indices = @transform_18, window_bounds = array<i64: 1, 32>}, {pipeline_mode = #tpu.pipeline_mode<synchronous>, transform_indices = @transform_19, window_bounds = array<i64: 1, 1>}, {transform_indices = @transform_20, window_bounds = array<i64: 2, 1>}]} {
    %c0 = arith.constant 0 : index
    %c0_0 = arith.constant 0 : index
    %c0_1 = arith.constant 0 : index
    %0 = vector.load %arg1[%c0, %c0_0, %c0_1] : memref<2x8x32xbf16, #tpu.memory_space<vmem>>, vector<2x8x32xbf16>
    %1 = vector.shape_cast %0 : vector<2x8x32xbf16> to vector<16x32xbf16>
    %2 = arith.extf %0 : vector<2x8x32xbf16> to vector<2x8x32xf32>
    %3 = vector.shape_cast %2 : vector<2x8x32xf32> to vector<16x32xf32>
    %c0_2 = arith.constant 0 : index
    %c0_3 = arith.constant 0 : index
    %4 = vector.load %arg3[%c0_2, %c0_3] : memref<32x96xbf16, #tpu.memory_space<vmem>>, vector<32x96xbf16>
    %cst = arith.constant dense<0.000000e+00> : vector<16x96xf32>
    %5 = tpu.matmul %1, %4, %cst {dimension_numbers = #tpu.dot_dimension_numbers<[1], [0], [0], [1], [0, 0, 1, 1], [], []>} : vector<16x32xbf16>, vector<32x96xbf16>, vector<16x96xf32> -> vector<16x96xf32>
    %c0_4 = arith.constant 0 : index
    %c0_5 = arith.constant 0 : index
    %6 = vector.load %arg4[%c0_4, %c0_5] : memref<1x96xf32, #tpu.memory_space<vmem>>, vector<1x96xf32>
    %7 = vector.broadcast %6 : vector<1x96xf32> to vector<16x96xf32>
    %8 = arith.addf %5, %7 : vector<16x96xf32>
    %9 = arith.truncf %8 : vector<16x96xf32> to vector<16x96xbf16>
    %10 = vector.extract_strided_slice %9 {offsets = [0, 0], sizes = [16, 32], strides = [1, 1]} : vector<16x96xbf16> to vector<16x32xbf16>
    %11 = vector.shape_cast %10 : vector<16x32xbf16> to vector<2x8x32xbf16>
    %12 = vector.extract_strided_slice %9 {offsets = [0, 32], sizes = [16, 32], strides = [1, 1]} : vector<16x96xbf16> to vector<16x32xbf16>
    %13 = vector.shape_cast %12 : vector<16x32xbf16> to vector<2x8x32xbf16>
    %14 = vector.extract_strided_slice %9 {offsets = [0, 64], sizes = [16, 32], strides = [1, 1]} : vector<16x96xbf16> to vector<16x32xbf16>
    %15 = vector.shape_cast %14 : vector<16x32xbf16> to vector<2x8x32xbf16>
    %cst_6 = arith.constant dense<0.000000e+00> : vector<2x8x8xf32>
    %16 = tpu.matmul %11, %13, %cst_6 {dimension_numbers = #tpu.dot_dimension_numbers<[2], [2], [1], [1], [0, 0, 0, 1, 1, 1], [0], [0]>} : vector<2x8x32xbf16>, vector<2x8x32xbf16>, vector<2x8x8xf32> -> vector<2x8x8xf32>
    %c0_7 = arith.constant 0 : index
    %c0_8 = arith.constant 0 : index
    %c0_9 = arith.constant 0 : index
    %17 = vector.load %arg2[%c0_7, %c0_8, %c0_9] : memref<2x1x8xf32, #tpu.memory_space<vmem>>, vector<2x1x8xf32>
    %18 = vector.broadcast %17 : vector<2x1x8xf32> to vector<2x8x8xf32>
    %19 = arith.addf %16, %18 : vector<2x8x8xf32>
    %cst_10 = arith.constant dense<0xFF800000> : vector<2x8xf32>
    %20 = vector.multi_reduction <maximumf>, %19, %cst_10 [2] : vector<2x8x8xf32> to vector<2x8xf32>
    %21 = vector.shape_cast %20 : vector<2x8xf32> to vector<2x8x1xf32>
    %22 = vector.broadcast %21 : vector<2x8x1xf32> to vector<2x8x8xf32>
    %23 = arith.subf %19, %22 : vector<2x8x8xf32>
    %24 = math.exp %23 : vector<2x8x8xf32>
    %cst_11 = arith.constant dense<0.000000e+00> : vector<2x8xf32>
    %25 = vector.multi_reduction <add>, %24, %cst_11 [2] : vector<2x8x8xf32> to vector<2x8xf32>
    %26 = vector.shape_cast %25 : vector<2x8xf32> to vector<2x8x1xf32>
    %27 = tpu.reciprocal %26 {approx = true} : vector<2x8x1xf32> -> vector<2x8x1xf32>
    %28 = vector.broadcast %27 : vector<2x8x1xf32> to vector<2x8x8xf32>
    %29 = arith.mulf %24, %28 : vector<2x8x8xf32>
    %30 = arith.truncf %29 : vector<2x8x8xf32> to vector<2x8x8xbf16>
    %cst_12 = arith.constant dense<0.000000e+00> : vector<2x8x32xf32>
    %31 = tpu.matmul %30, %15, %cst_12 {dimension_numbers = #tpu.dot_dimension_numbers<[2], [1], [1], [2], [0, 0, 0, 1, 1, 2], [0], [0]>} : vector<2x8x8xbf16>, vector<2x8x32xbf16>, vector<2x8x32xf32> -> vector<2x8x32xf32>
    %32 = vector.shape_cast %31 : vector<2x8x32xf32> to vector<16x32xf32>
    %33 = arith.truncf %32 : vector<16x32xf32> to vector<16x32xbf16>
    %c0_13 = arith.constant 0 : index
    %c0_14 = arith.constant 0 : index
    %34 = vector.load %arg5[%c0_13, %c0_14] : memref<32x32xbf16, #tpu.memory_space<vmem>>, vector<32x32xbf16>
    %cst_15 = arith.constant dense<0.000000e+00> : vector<16x32xf32>
    %35 = tpu.matmul %33, %34, %cst_15 {dimension_numbers = #tpu.dot_dimension_numbers<[1], [0], [0], [1], [0, 0, 1, 1], [], []>} : vector<16x32xbf16>, vector<32x32xbf16>, vector<16x32xf32> -> vector<16x32xf32>
    %c0_16 = arith.constant 0 : index
    %c0_17 = arith.constant 0 : index
    %36 = vector.load %arg6[%c0_16, %c0_17] : memref<1x32xf32, #tpu.memory_space<vmem>>, vector<1x32xf32>
    %37 = vector.broadcast %36 : vector<1x32xf32> to vector<16x32xf32>
    %38 = arith.addf %35, %37 : vector<16x32xf32>
    %39 = arith.addf %3, %38 : vector<16x32xf32>
    %c0_18 = arith.constant 0 : index
    %c0_19 = arith.constant 0 : index
    %40 = vector.load %arg7[%c0_18, %c0_19] : memref<1x32xf32, #tpu.memory_space<vmem>>, vector<1x32xf32>
    %c0_20 = arith.constant 0 : index
    %c0_21 = arith.constant 0 : index
    %41 = vector.load %arg8[%c0_20, %c0_21] : memref<1x32xf32, #tpu.memory_space<vmem>>, vector<1x32xf32>
    %cst_22 = arith.constant dense<0.000000e+00> : vector<16xf32>
    %42 = vector.multi_reduction <add>, %39, %cst_22 [1] : vector<16x32xf32> to vector<16xf32>
    %43 = vector.shape_cast %42 : vector<16xf32> to vector<16x1xf32>
    %cst_23 = arith.constant 3.200000e+01 : f32
    %44 = vector.broadcast %cst_23 : f32 to vector<16x1xf32>
    %45 = arith.divf %43, %44 : vector<16x1xf32>
    %46 = vector.broadcast %45 : vector<16x1xf32> to vector<16x32xf32>
    %47 = arith.subf %39, %46 : vector<16x32xf32>
    %48 = arith.mulf %47, %47 : vector<16x32xf32>
    %cst_24 = arith.constant dense<0.000000e+00> : vector<16xf32>
    %49 = vector.multi_reduction <add>, %48, %cst_24 [1] : vector<16x32xf32> to vector<16xf32>
    %50 = vector.shape_cast %49 : vector<16xf32> to vector<16x1xf32>
    %cst_25 = arith.constant 3.200000e+01 : f32
    %51 = vector.broadcast %cst_25 : f32 to vector<16x1xf32>
    %52 = arith.divf %50, %51 : vector<16x1xf32>
    %53 = vector.broadcast %45 : vector<16x1xf32> to vector<16x32xf32>
    %54 = arith.subf %39, %53 : vector<16x32xf32>
    %cst_26 = arith.constant 1.000000e-07 : f32
    %55 = vector.broadcast %cst_26 : f32 to vector<16x1xf32>
    %56 = arith.addf %52, %55 : vector<16x1xf32>
    %57 = math.rsqrt %56 : vector<16x1xf32>
    %58 = vector.broadcast %57 : vector<16x1xf32> to vector<16x32xf32>
    %59 = arith.mulf %54, %58 : vector<16x32xf32>
    %60 = vector.broadcast %40 : vector<1x32xf32> to vector<16x32xf32>
    %61 = arith.mulf %59, %60 : vector<16x32xf32>
    %62 = vector.broadcast %41 : vector<1x32xf32> to vector<16x32xf32>
    %63 = arith.addf %61, %62 : vector<16x32xf32>
    %64 = arith.truncf %63 : vector<16x32xf32> to vector<16x32xbf16>
    %cst_27 = arith.constant 0.000000e+00 : f32
    %65 = vector.broadcast %cst_27 : f32 to vector<16x32xf32>
    %c0_28 = arith.constant 0 : index
    %c0_29 = arith.constant 0 : index
    %66 = vector.load %arg22[%c0_28, %c0_29] : memref<16x32xf32, #tpu.memory_space<vmem>>, vector<16x32xf32>
    tpu.vector_store %arg22[%c0_28, %c0_29], %65 {strides = array<i32>} : memref<16x32xf32, #tpu.memory_space<vmem>>, vector<16x32xf32>,
    %c0_i32 = arith.constant 0 : i32
    %67 = arith.index_cast %c0_i32 : i32 to index
    %c0_30 = arith.constant 0 : index
    %c0_31 = arith.constant 0 : index
    %68 = vector.load %arg9[%67, %c0_30, %c0_31] : memref<1x32x128xbf16, #tpu.memory_space<vmem>>, vector<1x32x128xbf16>
    %69 = vector.shape_cast %68 : vector<1x32x128xbf16> to vector<32x128xbf16>
    %cst_32 = arith.constant dense<0.000000e+00> : vector<16x128xf32>
    %70 = tpu.matmul %64, %69, %cst_32 {dimension_numbers = #tpu.dot_dimension_numbers<[1], [0], [0], [1], [0, 0, 1, 1], [], []>} : vector<16x32xbf16>, vector<32x128xbf16>, vector<16x128xf32> -> vector<16x128xf32>
    %71 = arith.index_cast %c0_i32 : i32 to index
    %c0_33 = arith.constant 0 : index
    %c0_34 = arith.constant 0 : index
    %72 = vector.load %arg10[%71, %c0_33, %c0_34] : memref<1x1x128xf32, #tpu.memory_space<vmem>>, vector<1x1x128xf32>
    %73 = vector.shape_cast %72 : vector<1x1x128xf32> to vector<1x128xf32>
    %74 = vector.broadcast %73 : vector<1x128xf32> to vector<16x128xf32>
    %75 = arith.addf %70, %74 : vector<16x128xf32>
    %76 = arith.mulf %75, %75 : vector<16x128xf32>
    %77 = arith.mulf %75, %76 : vector<16x128xf32>
    %cst_35 = arith.constant 4.471500e-02 : f32
    %78 = vector.broadcast %cst_35 : f32 to vector<16x128xf32>
    %79 = arith.mulf %78, %77 : vector<16x128xf32>
    %80 = arith.addf %75, %79 : vector<16x128xf32>
    %cst_36 = arith.constant 0.797884583 : f32
    %81 = vector.broadcast %cst_36 : f32 to vector<16x128xf32>
    %82 = arith.mulf %81, %80 : vector<16x128xf32>
    %83 = math.tanh %82 : vector<16x128xf32>
    %cst_37 = arith.constant 1.000000e+00 : f32
    %84 = vector.broadcast %cst_37 : f32 to vector<16x128xf32>
    %85 = arith.addf %84, %83 : vector<16x128xf32>
    %cst_38 = arith.constant 5.000000e-01 : f32
    %86 = vector.broadcast %cst_38 : f32 to vector<16x128xf32>
    %87 = arith.mulf %86, %85 : vector<16x128xf32>
    %88 = arith.mulf %75, %87 : vector<16x128xf32>
    %c0_39 = arith.constant 0 : index
    %c0_40 = arith.constant 0 : index
    %89 = vector.load %arg22[%c0_39, %c0_40] : memref<16x32xf32, #tpu.memory_space<vmem>>, vector<16x32xf32>
    %90 = arith.truncf %88 : vector<16x128xf32> to vector<16x128xbf16>
    %91 = arith.index_cast %c0_i32 : i32 to index
    %c0_41 = arith.constant 0 : index
    %c0_42 = arith.constant 0 : index
    %92 = vector.load %arg11[%91, %c0_41, %c0_42] : memref<1x128x32xbf16, #tpu.memory_space<vmem>>, vector<1x128x32xbf16>
    %93 = vector.shape_cast %92 : vector<1x128x32xbf16> to vector<128x32xbf16>
    %cst_43 = arith.constant dense<0.000000e+00> : vector<16x32xf32>
    %94 = tpu.matmul %90, %93, %cst_43 {dimension_numbers = #tpu.dot_dimension_numbers<[1], [0], [0], [1], [0, 0, 1, 1], [], []>} : vector<16x128xbf16>, vector<128x32xbf16>, vector<16x32xf32> -> vector<16x32xf32>
    %95 = arith.addf %89, %94 : vector<16x32xf32>
    %c0_44 = arith.constant 0 : index
    %c0_45 = arith.constant 0 : index
    %96 = vector.load %arg22[%c0_44, %c0_45] : memref<16x32xf32, #tpu.memory_space<vmem>>, vector<16x32xf32>
    tpu.vector_store %arg22[%c0_44, %c0_45], %95 {strides = array<i32>} : memref<16x32xf32, #tpu.memory_space<vmem>>, vector<16x32xf32>,
    %c1_i32 = arith.constant 1 : i32
    %c0_46 = arith.constant 0 : index
    %c0_47 = arith.constant 0 : index
    %97 = vector.load %arg22[%c0_46, %c0_47] : memref<16x32xf32, #tpu.memory_space<vmem>>, vector<16x32xf32>
    %98 = arith.addf %63, %97 : vector<16x32xf32>
    %c0_48 = arith.constant 0 : index
    %c0_49 = arith.constant 0 : index
    %99 = vector.load %arg12[%c0_48, %c0_49] : memref<1x32xf32, #tpu.memory_space<vmem>>, vector<1x32xf32>
    %100 = vector.broadcast %99 : vector<1x32xf32> to vector<16x32xf32>
    %101 = arith.addf %98, %100 : vector<16x32xf32>
    %c0_50 = arith.constant 0 : index
    %c0_51 = arith.constant 0 : index
    %102 = vector.load %arg13[%c0_50, %c0_51] : memref<1x32xf32, #tpu.memory_space<vmem>>, vector<1x32xf32>
    %c0_52 = arith.constant 0 : index
    %c0_53 = arith.constant 0 : index
    %103 = vector.load %arg14[%c0_52, %c0_53] : memref<1x32xf32, #tpu.memory_space<vmem>>, vector<1x32xf32>
    %cst_54 = arith.constant dense<0.000000e+00> : vector<16xf32>
    %104 = vector.multi_reduction <add>, %101, %cst_54 [1] : vector<16x32xf32> to vector<16xf32>
    %105 = vector.shape_cast %104 : vector<16xf32> to vector<16x1xf32>
    %cst_55 = arith.constant 3.200000e+01 : f32
    %106 = vector.broadcast %cst_55 : f32 to vector<16x1xf32>
    %107 = arith.divf %105, %106 : vector<16x1xf32>
    %108 = vector.broadcast %107 : vector<16x1xf32> to vector<16x32xf32>
    %109 = arith.subf %101, %108 : vector<16x32xf32>
    %110 = arith.mulf %109, %109 : vector<16x32xf32>
    %cst_56 = arith.constant dense<0.000000e+00> : vector<16xf32>
    %111 = vector.multi_reduction <add>, %110, %cst_56 [1] : vector<16x32xf32> to vector<16xf32>
    %112 = vector.shape_cast %111 : vector<16xf32> to vector<16x1xf32>
    %cst_57 = arith.constant 3.200000e+01 : f32
    %113 = vector.broadcast %cst_57 : f32 to vector<16x1xf32>
    %114 = arith.divf %112, %113 : vector<16x1xf32>
    %115 = vector.broadcast %107 : vector<16x1xf32> to vector<16x32xf32>
    %116 = arith.subf %101, %115 : vector<16x32xf32>
    %cst_58 = arith.constant 1.000000e-07 : f32
    %117 = vector.broadcast %cst_58 : f32 to vector<16x1xf32>
    %118 = arith.addf %114, %117 : vector<16x1xf32>
    %119 = math.rsqrt %118 : vector<16x1xf32>
    %120 = vector.broadcast %119 : vector<16x1xf32> to vector<16x32xf32>
    %121 = arith.mulf %116, %120 : vector<16x32xf32>
    %122 = vector.broadcast %102 : vector<1x32xf32> to vector<16x32xf32>
    %123 = arith.mulf %121, %122 : vector<16x32xf32>
    %124 = vector.broadcast %103 : vector<1x32xf32> to vector<16x32xf32>
    %125 = arith.addf %123, %124 : vector<16x32xf32>
    %126 = vector.shape_cast %125 : vector<16x32xf32> to vector<2x8x32xf32>
    %127 = arith.truncf %125 : vector<16x32xf32> to vector<16x32xbf16>
    %c0_59 = arith.constant 0 : index
    %c0_60 = arith.constant 0 : index
    %128 = vector.load %arg15[%c0_59, %c0_60] : memref<32x32xbf16, #tpu.memory_space<vmem>>, vector<32x32xbf16>
    %cst_61 = arith.constant dense<0.000000e+00> : vector<16x32xf32>
    %129 = tpu.matmul %127, %128, %cst_61 {dimension_numbers = #tpu.dot_dimension_numbers<[1], [0], [0], [1], [0, 0, 1, 1], [], []>} : vector<16x32xbf16>, vector<32x32xbf16>, vector<16x32xf32> -> vector<16x32xf32>
    %c0_62 = arith.constant 0 : index
    %c0_63 = arith.constant 0 : index
    %130 = vector.load %arg16[%c0_62, %c0_63] : memref<1x32xf32, #tpu.memory_space<vmem>>, vector<1x32xf32>
    %131 = vector.broadcast %130 : vector<1x32xf32> to vector<16x32xf32>
    %132 = arith.addf %129, %131 : vector<16x32xf32>
    %133 = math.tanh %132 : vector<16x32xf32>
    %c0_64 = arith.constant 0 : index
    %c0_65 = arith.constant 0 : index
    %134 = vector.load %arg17[%c0_64, %c0_65] : memref<1x32xf32, #tpu.memory_space<vmem>>, vector<1x32xf32>
    %135 = vector.broadcast %134 : vector<1x32xf32> to vector<16x32xf32>
    %136 = arith.mulf %133, %135 : vector<16x32xf32>
    %cst_66 = arith.constant dense<0.000000e+00> : vector<16xf32>
    %137 = vector.multi_reduction <add>, %136, %cst_66 [1] : vector<16x32xf32> to vector<16xf32>
    %138 = vector.shape_cast %137 : vector<16xf32> to vector<16x1xf32>
    %c0_67 = arith.constant 0 : index
    %c0_68 = arith.constant 0 : index
    %139 = vector.load %arg18[%c0_67, %c0_68] : memref<1x1xf32, #tpu.memory_space<vmem>>, vector<1x1xf32>
    %140 = vector.broadcast %139 : vector<1x1xf32> to vector<16x1xf32>
    %141 = arith.addf %138, %140 : vector<16x1xf32>
    %142 = vector.shape_cast %141 : vector<16x1xf32> to vector<2x8x1xf32>
    %cst_69 = arith.constant dense<0xFF800000> : vector<2x1xf32>
    %143 = vector.multi_reduction <maximumf>, %142, %cst_69 [1] : vector<2x8x1xf32> to vector<2x1xf32>
    %144 = vector.shape_cast %143 : vector<2x1xf32> to vector<2x1x1xf32>
    %145 = vector.broadcast %144 : vector<2x1x1xf32> to vector<2x8x1xf32>
    %146 = arith.subf %142, %145 : vector<2x8x1xf32>
    %147 = math.exp %146 : vector<2x8x1xf32>
    %cst_70 = arith.constant dense<0.000000e+00> : vector<2x1xf32>
    %148 = vector.multi_reduction <add>, %147, %cst_70 [1] : vector<2x8x1xf32> to vector<2x1xf32>
    %149 = vector.shape_cast %148 : vector<2x1xf32> to vector<2x1x1xf32>
    %150 = vector.broadcast %149 : vector<2x1x1xf32> to vector<2x8x1xf32>
    %151 = arith.divf %147, %150 : vector<2x8x1xf32>
    %152 = vector.broadcast %151 : vector<2x8x1xf32> to vector<2x8x32xf32>
    %153 = arith.mulf %152, %126 : vector<2x8x32xf32>
    %cst_71 = arith.constant dense<0.000000e+00> : vector<2x32xf32>
    %154 = vector.multi_reduction <add>, %153, %cst_71 [1] : vector<2x8x32xf32> to vector<2x32xf32>
    %c0_72 = arith.constant 0 : index
    %c0_73 = arith.constant 0 : index
    %155 = vector.load %arg19[%c0_72, %c0_73] : memref<1x32xf32, #tpu.memory_space<vmem>>, vector<1x32xf32>
    %156 = vector.broadcast %155 : vector<1x32xf32> to vector<2x32xf32>
    %157 = arith.mulf %154, %156 : vector<2x32xf32>
    %cst_74 = arith.constant dense<0.000000e+00> : vector<2xf32>
    %158 = vector.multi_reduction <add>, %157, %cst_74 [1] : vector<2x32xf32> to vector<2xf32>
    %159 = vector.shape_cast %158 : vector<2xf32> to vector<2x1xf32>
    %c0_75 = arith.constant 0 : index
    %c0_76 = arith.constant 0 : index
    %160 = vector.load %arg20[%c0_75, %c0_76] : memref<1x1xf32, #tpu.memory_space<vmem>>, vector<1x1xf32>
    %161 = vector.broadcast %160 : vector<1x1xf32> to vector<2x1xf32>
    %162 = arith.addf %159, %161 : vector<2x1xf32>
    %c0_77 = arith.constant 0 : index
    %c0_78 = arith.constant 0 : index
    %163 = vector.load %arg21[%c0_77, %c0_78] : memref<2x1xf32, #tpu.memory_space<vmem>>, vector<2x1xf32>
    tpu.vector_store %arg21[%c0_77, %c0_78], %162 {strides = array<i32>} : memref<2x1xf32, #tpu.memory_space<vmem>>, vector<2x1xf32>,
    return
  }
  func.func @transform_0(%arg0: i32) -> (i32, i32, i32) {
    %c0_i32 = arith.constant 0 : i32
    %c0_i32_0 = arith.constant 0 : i32
    %c0_i32_1 = arith.constant 0 : i32
    return %arg0, %c0_i32, %c0_i32_0 : i32, i32, i32
  }
  func.func @transform_1(%arg0: i32) -> (i32, i32, i32) {
    %c0_i32 = arith.constant 0 : i32
    %c0_i32_0 = arith.constant 0 : i32
    %c0_i32_1 = arith.constant 0 : i32
    return %arg0, %c0_i32, %c0_i32_0 : i32, i32, i32
  }
  func.func @transform_2(%arg0: i32) -> (i32, i32) {
    %c0_i32 = arith.constant 0 : i32
    %c0_i32_0 = arith.constant 0 : i32
    %c0_i32_1 = arith.constant 0 : i32
    return %c0_i32, %c0_i32_0 : i32, i32
  }
  func.func @transform_3(%arg0: i32) -> (i32, i32) {
    %c0_i32 = arith.constant 0 : i32
    %c0_i32_0 = arith.constant 0 : i32
    %c0_i32_1 = arith.constant 0 : i32
    return %c0_i32, %c0_i32_0 : i32, i32
  }
  func.func @transform_4(%arg0: i32) -> (i32, i32) {
    %c0_i32 = arith.constant 0 : i32
    %c0_i32_0 = arith.constant 0 : i32
    %c0_i32_1 = arith.constant 0 : i32
    return %c0_i32, %c0_i32_0 : i32, i32
  }
  func.func @transform_5(%arg0: i32) -> (i32, i32) {
    %c0_i32 = arith.constant 0 : i32
    %c0_i32_0 = arith.constant 0 : i32
    %c0_i32_1 = arith.constant 0 : i32
    return %c0_i32, %c0_i32_0 : i32, i32
  }
  func.func @transform_6(%arg0: i32) -> (i32, i32) {
    %c0_i32 = arith.constant 0 : i32
    %c0_i32_0 = arith.constant 0 : i32
    %c0_i32_1 = arith.constant 0 : i32
    return %c0_i32, %c0_i32_0 : i32, i32
  }
  func.func @transform_7(%arg0: i32) -> (i32, i32) {
    %c0_i32 = arith.constant 0 : i32
    %c0_i32_0 = arith.constant 0 : i32
    %c0_i32_1 = arith.constant 0 : i32
    return %c0_i32, %c0_i32_0 : i32, i32
  }
  func.func @transform_8(%arg0: i32) -> (i32, i32, i32) {
    %c0_i32 = arith.constant 0 : i32
    %c0_i32_0 = arith.constant 0 : i32
    %c0_i32_1 = arith.constant 0 : i32
    %c0_i32_2 = arith.constant 0 : i32
    return %c0_i32, %c0_i32_0, %c0_i32_1 : i32, i32, i32
  }
  func.func @transform_9(%arg0: i32) -> (i32, i32, i32) {
    %c0_i32 = arith.constant 0 : i32
    %c0_i32_0 = arith.constant 0 : i32
    %c0_i32_1 = arith.constant 0 : i32
    %c0_i32_2 = arith.constant 0 : i32
    return %c0_i32, %c0_i32_0, %c0_i32_1 : i32, i32, i32
  }
  func.func @transform_10(%arg0: i32) -> (i32, i32, i32) {
    %c0_i32 = arith.constant 0 : i32
    %c0_i32_0 = arith.constant 0 : i32
    %c0_i32_1 = arith.constant 0 : i32
    %c0_i32_2 = arith.constant 0 : i32
    return %c0_i32, %c0_i32_0, %c0_i32_1 : i32, i32, i32
  }
  func.func @transform_11(%arg0: i32) -> (i32, i32) {
    %c0_i32 = arith.constant 0 : i32
    %c0_i32_0 = arith.constant 0 : i32
    %c0_i32_1 = arith.constant 0 : i32
    return %c0_i32, %c0_i32_0 : i32, i32
  }
  func.func @transform_12(%arg0: i32) -> (i32, i32) {
    %c0_i32 = arith.constant 0 : i32
    %c0_i32_0 = arith.constant 0 : i32
    %c0_i32_1 = arith.constant 0 : i32
    return %c0_i32, %c0_i32_0 : i32, i32
  }
  func.func @transform_13(%arg0: i32) -> (i32, i32) {
    %c0_i32 = arith.constant 0 : i32
    %c0_i32_0 = arith.constant 0 : i32
    %c0_i32_1 = arith.constant 0 : i32
    return %c0_i32, %c0_i32_0 : i32, i32
  }
  func.func @transform_14(%arg0: i32) -> (i32, i32) {
    %c0_i32 = arith.constant 0 : i32
    %c0_i32_0 = arith.constant 0 : i32
    %c0_i32_1 = arith.constant 0 : i32
    return %c0_i32, %c0_i32_0 : i32, i32
  }
  func.func @transform_15(%arg0: i32) -> (i32, i32) {
    %c0_i32 = arith.constant 0 : i32
    %c0_i32_0 = arith.constant 0 : i32
    %c0_i32_1 = arith.constant 0 : i32
    return %c0_i32, %c0_i32_0 : i32, i32
  }
  func.func @transform_16(%arg0: i32) -> (i32, i32) {
    %c0_i32 = arith.constant 0 : i32
    %c0_i32_0 = arith.constant 0 : i32
    %c0_i32_1 = arith.constant 0 : i32
    return %c0_i32, %c0_i32_0 : i32, i32
  }
  func.func @transform_17(%arg0: i32) -> (i32, i32) {
    %c0_i32 = arith.constant 0 : i32
    %c0_i32_0 = arith.constant 0 : i32
    %c0_i32_1 = arith.constant 0 : i32
    return %c0_i32, %c0_i32_0 : i32, i32
  }
  func.func @transform_18(%arg0: i32) -> (i32, i32) {
    %c0_i32 = arith.constant 0 : i32
    %c0_i32_0 = arith.constant 0 : i32
    %c0_i32_1 = arith.constant 0 : i32
    return %c0_i32, %c0_i32_0 : i32, i32
  }
  func.func @transform_19(%arg0: i32) -> (i32, i32) {
    %c0_i32 = arith.constant 0 : i32
    %c0_i32_0 = arith.constant 0 : i32
    %c0_i32_1 = arith.constant 0 : i32
    return %c0_i32, %c0_i32_0 : i32, i32
  }
  func.func @transform_20(%arg0: i32) -> (i32, i32) {
    %c0_i32 = arith.constant 0 : i32
    %c0_i32_0 = arith.constant 0 : i32
    return %arg0, %c0_i32 : i32, i32
  }
}

</mosaic_0001>

<llo_original>
// kernel: forward.1
$region0: #{forward.1}
  #allocation0 [shape = 'u32[]', space=smem, size = 0x4, offset = 0x4, fixed_abs, tag = 'smem constant byte address 0x4 - core index']
  #allocation1 [shape = 'u32[144,128]{1,0:T(1,128)}', space=vmem, size = 0x12000, scoped, tag = 'internal scratch']
  #allocation2 [shape = 'f32[16,32]{1,0:T(8,128)}', space=vmem, size = 0x2000, scoped, tag = 'scratch operand']
  #allocation3 [shape = 'f32[1,1]{1,0:T(1,128)S(1)}', space=vmem, size = 0x200, scoped, tag = 'scoped memory for forward.1']
  #allocation4 [shape = 'f32[1,1]{1,0:T(1,128)S(1)}', space=vmem, size = 0x200, scoped, tag = 'scoped memory for forward.1']
  %s0 = inlined_call_operand.vmem [shape: bf16[2,8,32], index: 0, kind: input, shape index: {}]
  %s1 = inlined_call_operand.vmem [shape: f32[2,1,8], index: 1, kind: input, shape index: {}]
  %s2 = inlined_call_operand.vmem [shape: bf16[32,96], index: 2, kind: input, shape index: {}]
  %s3 = inlined_call_operand.vmem [shape: f32[1,96], index: 3, kind: input, shape index: {}]
  %s4 = inlined_call_operand.vmem [shape: bf16[32,32], index: 4, kind: input, shape index: {}]
  %s5 = inlined_call_operand.vmem [shape: f32[1,32], index: 5, kind: input, shape index: {}]
  %s6 = inlined_call_operand.vmem [shape: f32[1,32], index: 6, kind: input, shape index: {}]
  %s7 = inlined_call_operand.vmem [shape: f32[1,32], index: 7, kind: input, shape index: {}]
  %s8 = inlined_call_operand.vmem [shape: bf16[1,32,128], index: 8, kind: input, shape index: {}]
  %s9 = inlined_call_operand.vmem [shape: f32[1,1,128], index: 9, kind: input, shape index: {}]
  %s10 = inlined_call_operand.vmem [shape: bf16[1,128,32], index: 10, kind: input, shape index: {}]
  %s11 = inlined_call_operand.vmem [shape: f32[1,32], index: 11, kind: input, shape index: {}]
  %s12 = inlined_call_operand.vmem [shape: f32[1,32], index: 12, kind: input, shape index: {}]
  %s13 = inlined_call_operand.vmem [shape: f32[1,32], index: 13, kind: input, shape index: {}]
  %s14 = inlined_call_operand.vmem [shape: bf16[32,32], index: 14, kind: input, shape index: {}]
  %s15 = inlined_call_operand.vmem [shape: f32[1,32], index: 15, kind: input, shape index: {}]
  %s16 = inlined_call_operand.vmem [shape: f32[1,32], index: 16, kind: input, shape index: {}]
  %s17 = inlined_call_operand.<no memory space> [shape: f32[1,1], index: 17, kind: input, shape index: {}]
  %s18 = inlined_call_operand.vmem [shape: f32[1,32], index: 18, kind: input, shape index: {}]
  %s19 = inlined_call_operand.<no memory space> [shape: f32[1,1], index: 19, kind: input, shape index: {}]
  %s20 = inlined_call_operand.vmem [shape: f32[2,1], index: 20, kind: output, shape index: {}]
  %s21 = sld [smem:[#allocation0]]
  $region90: #{forward.1} parent=0
    _
  %s23 = ssub.s32 1, %s21
  %s24 = scalar_select 0, %s23, %s21
  %v25 = vstv %s17
  %26 = vst [vmem:[#allocation3] sm:$0x1] %v25
  %v27 = vstv %s19
  %28 = vst [vmem:[#allocation4] sm:$0x1] %v27
  // Predicated region
  $region2: #{forward.1} parent=0 // pred_check
    _
  $region3: #{forward.1} parent=0 // pred_check_branch
    %30 = sbr.rel (0) target = $region5
  $region4: #{forward.1} parent=0 // pred_region
    _
  $region5: #{forward.1} parent=0 // pred_fallthru
    _
  // Predicated region
  $region6: #{forward.1} parent=0 // pred_check
    _
  $region7: #{forward.1} parent=0 // pred_check_branch
    %32 = sbr.rel (0) target = $region9
  $region8: #{forward.1} parent=0 // pred_region
    _
  $region9: #{forward.1} parent=0 // pred_fallthru
    _
  // Predicated region
  $region10: #{forward.1} parent=0 // pred_check
    _
  $region11: #{forward.1} parent=0 // pred_check_branch
    %34 = sbr.rel (0) target = $region13
  $region12: #{forward.1} parent=0 // pred_region
    _
  $region13: #{forward.1} parent=0 // pred_fallthru
    _
  // Predicated region
  $region14: #{forward.1} parent=0 // pred_check
    _
  $region15: #{forward.1} parent=0 // pred_check_branch
    %36 = sbr.rel (0) target = $region17
  $region16: #{forward.1} parent=0 // pred_region
    _
  $region17: #{forward.1} parent=0 // pred_fallthru
    _
  // Predicated region
  $region18: #{forward.1} parent=0 // pred_check
    _
  $region19: #{forward.1} parent=0 // pred_check_branch
    %38 = sbr.rel (0) target = $region21
  $region20: #{forward.1} parent=0 // pred_region
    _
  $region21: #{forward.1} parent=0 // pred_fallthru
    _
  // Predicated region
  $region22: #{forward.1} parent=0 // pred_check
    _
  $region23: #{forward.1} parent=0 // pred_check_branch
    %40 = sbr.rel (0) target = $region25
  $region24: #{forward.1} parent=0 // pred_region
    _
  $region25: #{forward.1} parent=0 // pred_fallthru
    _
  // Predicated region
  $region26: #{forward.1} parent=0 // pred_check
    _
  $region27: #{forward.1} parent=0 // pred_check_branch
    %42 = sbr.rel (0) target = $region29
  $region28: #{forward.1} parent=0 // pred_region
    _
  $region29: #{forward.1} parent=0 // pred_fallthru
    _
  // Predicated region
  $region30: #{forward.1} parent=0 // pred_check
    _
  $region31: #{forward.1} parent=0 // pred_check_branch
    %44 = sbr.rel (0) target = $region33
  $region32: #{forward.1} parent=0 // pred_region
    _
  $region33: #{forward.1} parent=0 // pred_fallthru
    _
  // Predicated region
  $region34: #{forward.1} parent=0 // pred_check
    _
  $region35: #{forward.1} parent=0 // pred_check_branch
    %46 = sbr.rel (0) target = $region37
  $region36: #{forward.1} parent=0 // pred_region
    _
  $region37: #{forward.1} parent=0 // pred_fallthru
    _
  // Predicated region
  $region38: #{forward.1} parent=0 // pred_check
    _
  $region39: #{forward.1} parent=0 // pred_check_branch
    %48 = sbr.rel (0) target = $region41
  $region40: #{forward.1} parent=0 // pred_region
    _
  $region41: #{forward.1} parent=0 // pred_fallthru
    _
  // Predicated region
  $region42: #{forward.1} parent=0 // pred_check
    _
  $region43: #{forward.1} parent=0 // pred_check_branch
    %50 = sbr.rel (0) target = $region45
  $region44: #{forward.1} parent=0 // pred_region
    _
  $region45: #{forward.1} parent=0 // pred_fallthru
    _
  // Predicated region
  $region46: #{forward.1} parent=0 // pred_check
    _
  $region47: #{forward.1} parent=0 // pred_check_branch
    %52 = sbr.rel (0) target = $region49
  $region48: #{forward.1} parent=0 // pred_region
    _
  $region49: #{forward.1} parent=0 // pred_fallthru
    _
  // Predicated region
  $region50: #{forward.1} parent=0 // pred_check
    _
  $region51: #{forward.1} parent=0 // pred_check_branch
    %54 = sbr.rel (0) target = $region53
  $region52: #{forward.1} parent=0 // pred_region
    _
  $region53: #{forward.1} parent=0 // pred_fallthru
    _
  // Predicated region
  $region54: #{forward.1} parent=0 // pred_check
    _
  $region55: #{forward.1} parent=0 // pred_check_branch
    %56 = sbr.rel (0) target = $region57
  $region56: #{forward.1} parent=0 // pred_region
    _
  $region57: #{forward.1} parent=0 // pred_fallthru
    _
  // Predicated region
  $region58: #{forward.1} parent=0 // pred_check
    _
  $region59: #{forward.1} parent=0 // pred_check_branch
    %58 = sbr.rel (0) target = $region61
  $region60: #{forward.1} parent=0 // pred_region
    _
  $region61: #{forward.1} parent=0 // pred_fallthru
    _
  // Predicated region
  $region62: #{forward.1} parent=0 // pred_check
    _
  $region63: #{forward.1} parent=0 // pred_check_branch
    %60 = sbr.rel (0) target = $region65
  $region64: #{forward.1} parent=0 // pred_region
    _
  $region65: #{forward.1} parent=0 // pred_fallthru
    _
  // Predicated region
  $region66: #{forward.1} parent=0 // pred_check
    _
  $region67: #{forward.1} parent=0 // pred_check_branch
    %62 = sbr.rel (0) target = $region69
  $region68: #{forward.1} parent=0 // pred_region
    _
  $region69: #{forward.1} parent=0 // pred_fallthru
    _
  // Predicated region
  $region70: #{forward.1} parent=0 // pred_check
    _
  $region71: #{forward.1} parent=0 // pred_check_branch
    %64 = sbr.rel (0) target = $region73
  $region72: #{forward.1} parent=0 // pred_region
    _
  $region73: #{forward.1} parent=0 // pred_fallthru
    _
  // Predicated region
  $region74: #{forward.1} parent=0 // pred_check
    _
  $region75: #{forward.1} parent=0 // pred_check_branch
    %66 = sbr.rel (0) target = $region77
  $region76: #{forward.1} parent=0 // pred_region
    _
  $region77: #{forward.1} parent=0 // pred_fallthru
    _
  // Predicated region
  $region78: #{forward.1} parent=0 // pred_check
    _
  $region79: #{forward.1} parent=0 // pred_check_branch
    %68 = sbr.rel (0) target = $region81
  $region80: #{forward.1} parent=0 // pred_region
    _
  $region81: #{forward.1} parent=0 // pred_fallthru
    _
  %v70 = vld [vmem:[%s0] sm:$0xf]
  %v71 = vld [vmem:[%s0 + $0x4] sm:$0xf]
  %v72 = vunpack.c.l.bf16 %v70
  %v73 = vunpack.c.l.bf16 %v71
  %v74 = vld [vmem:[%s2] sm:$0xf]
  %v75 = vld [vmem:[%s2 + $0x4] sm:$0xf]
  %v76 = vld [vmem:[%s2 + $0x8] sm:$0xf]
  %v77 = vld [vmem:[%s2 + $0xc] sm:$0xf]
  %v78 = vld [vmem:[%s3] sm:$0x1]
  %v80 = vlaneseq
  %v81 = vshrl.u32 %v80, 7
  %v82 = vsub.s32 0, %v81
  %v83 = vrot.slane %v78, %v82
  %v87 = vunpack.c.l.b16 %v70
  %v88 = vunpack.c.l.b16 %v71
  %v89 = vpack.c.b16 %v88, %v87
  %v94 = vunpack.c.l.b16 %v74
  %v95 = vunpack.c.l.b16 %v75
  %v96 = vunpack.c.l.b16 %v76
  %v97 = vunpack.c.l.b16 %v77
  %v98 = vpack.c.b16 %v95, %v94
  %v99 = vpack.c.b16 %v97, %v96
  %vm102 = vcmask 261120
  %v104 = vsel %vm102, %v89, 0
  %106 = vmatprep.subr.bf16.mxu0 0
  %107 = vmatpush1.bf16.msra.mxu0 0
  %108 = vmatprep.subr.bf16.mxu0 0
  %109 = vmatpush1.bf16.msra.mxu0 0
  %110 = vmatprep.subr.bf16.mxu0 0
  %111 = vmatpush1.bf16.msra.mxu0 0
  %112 = vmatprep.subr.bf16.mxu0 0
  %113 = vmatpush1.bf16.msra.mxu0 0
  %114 = vmatprep.subr.bf16.mxu0 0
  %115 = vmatpush1.bf16.msra.mxu0 0
  %116 = vmatprep.subr.bf16.mxu0 0
  %117 = vmatpush1.bf16.msra.mxu0 0
  %118 = vmatprep.subr.bf16.mxu0 0
  %119 = vmatpush1.bf16.msra.mxu0 %v99
  %120 = vmatprep.subr.bf16.mxu0 0
  %121 = vmatpush1.bf16.msra.mxu0 %v98
  %122 = vmatprep.subr.bf16.mxu0 0
  %123 = vmatpush2.bf16.msra.mxu0 0
  %124 = vmatprep.subr.bf16.mxu0 0
  %125 = vmatpush2.bf16.msra.mxu0 0
  %126 = vmatprep.subr.bf16.mxu0 0
  %127 = vmatpush2.bf16.msra.mxu0 0
  %128 = vmatprep.subr.bf16.mxu0 0
  %129 = vmatpush2.bf16.msra.mxu0 0
  %130 = vmatprep.subr.bf16.mxu0 0
  %131 = vmatpush2.bf16.msra.mxu0 0
  %132 = vmatprep.subr.bf16.mxu0 0
  %133 = vmatpush2.bf16.msra.mxu0 0
  %134 = vmatprep.subr.bf16.mxu0 0
  %135 = vmatpush2.bf16.msra.mxu0 0
  %136 = vmatprep.subr.bf16.mxu0 0
  %137 = vmatpush2.bf16.msra.mxu0 0
  %138 = vmatprep.mubr.bf16.mxu0 0
  %139 = vmatmul.mubr.bf16.gmra.mxu0 %v104
  %v140 = vpop.f32.mrf.mxu0
  %v141 = vadd.f32 %v83, %v140
  %v142 = vpop.f32.mrf.mxu0
  %v143 = vpop.f32.mrf.mxu0
  %v144 = vadd.f32 %v83, %v143
  %v145 = vpop.f32.mrf.mxu0
  %146 = vdwg.mxu0
  %v147 = vpack.c.bf16 %v144, %v141
  %v149 = vunpack.c.l.b16 %v147
  %v150 = vunpack.c.h.b16 %v147
  %v151 = vpack.c.b16 %v149, %v149
  %v152 = vpack.c.b16 %v150, %v150
  %v153 = vld [vmem:[%s1] sm:$0x1]
  %v154 = vld [vmem:[%s1 + $0x1] sm:$0x1]
  %v157 = vlaneseq
  %v158 = vshrl.u32 %v157, 7
  %v159 = vsub.s32 0, %v158
  %v160 = vrot.slane %v153, %v159
  %v161 = vlaneseq
  %v162 = vshrl.u32 %v161, 7
  %v163 = vsub.s32 0, %v162
  %v164 = vrot.slane %v154, %v163
  %167 = vrot.lane.b32.xlu0 %v151, 96
  %v168 = vpop.permute.xlu0 %167
  %v170 = vsel %vm102, %v151, 0
  %v173 = vsel %vm102, %v168, 0
  %175 = vmatprep.subr.bf16.mxu0 0
  %176 = vmatpush1.bf16.xpose.msra.mxu0 0
  %177 = vmatprep.subr.bf16.mxu0 0
  %178 = vmatpush1.bf16.xpose.msra.mxu0 0
  %179 = vmatprep.subr.bf16.mxu0 0
  %180 = vmatpush1.bf16.xpose.msra.mxu0 0
  %181 = vmatprep.subr.bf16.mxu0 0
  %182 = vmatpush1.bf16.xpose.msra.mxu0 0
  %183 = vmatprep.subr.bf16.mxu0 0
  %184 = vmatpush1.bf16.xpose.msra.mxu0 0
  %185 = vmatprep.subr.bf16.mxu0 0
  %186 = vmatpush1.bf16.xpose.msra.mxu0 0
  %187 = vmatprep.subr.bf16.mxu0 0
  %188 = vmatpush1.bf16.xpose.msra.mxu0 0
  %189 = vmatprep.subr.bf16.mxu0 0
  %190 = vmatpush1.bf16.xpose.msra.mxu0 %v173
  %191 = vmatprep.subr.bf16.mxu0 0
  %192 = vmatpush2.bf16.xpose.msra.mxu0 0
  %193 = vmatprep.subr.bf16.mxu0 0
  %194 = vmatpush2.bf16.xpose.msra.mxu0 0
  %195 = vmatprep.subr.bf16.mxu0 0
  %196 = vmatpush2.bf16.xpose.msra.mxu0 0
  %197 = vmatprep.subr.bf16.mxu0 0
  %198 = vmatpush2.bf16.xpose.msra.mxu0 0
  %199 = vmatprep.subr.bf16.mxu0 0
  %200 = vmatpush2.bf16.xpose.msra.mxu0 0
  %201 = vmatprep.subr.bf16.mxu0 0
  %202 = vmatpush2.bf16.xpose.msra.mxu0 0
  %203 = vmatprep.subr.bf16.mxu0 0
  %204 = vmatpush2.bf16.xpose.msra.mxu0 0
  %205 = vmatprep.subr.bf16.mxu0 0
  %206 = vmatpush2.bf16.xpose.msra.mxu0 0
  %207 = vmatprep.mubr.bf16.mxu0 0
  %208 = vmatmul.mubr.bf16.gmra.mxu0 %v170
  %v209 = vpop.f32.mrf.mxu0
  %v210 = vadd.f32 %v160, %v209
  %v211 = vpop.f32.mrf.mxu0
  %v212 = vpop.f32.mrf.mxu0
  %v213 = vpop.f32.mrf.mxu0
  %214 = vdwg.mxu0
  %215 = vrot.lane.b32.xlu0 %v152, 96
  %v216 = vpop.permute.xlu0 %215
  %v218 = vsel %vm102, %v152, 0
  %v221 = vsel %vm102, %v216, 0
  %223 = vmatprep.subr.bf16.mxu0 0
  %224 = vmatpush1.bf16.xpose.msra.mxu0 0
  %225 = vmatprep.subr.bf16.mxu0 0
  %226 = vmatpush1.bf16.xpose.msra.mxu0 0
  %227 = vmatprep.subr.bf16.mxu0 0
  %228 = vmatpush1.bf16.xpose.msra.mxu0 0
  %229 = vmatprep.subr.bf16.mxu0 0
  %230 = vmatpush1.bf16.xpose.msra.mxu0 0
  %231 = vmatprep.subr.bf16.mxu0 0
  %232 = vmatpush1.bf16.xpose.msra.mxu0 0
  %233 = vmatprep.subr.bf16.mxu0 0
  %234 = vmatpush1.bf16.xpose.msra.mxu0 0
  %235 = vmatprep.subr.bf16.mxu0 0
  %236 = vmatpush1.bf16.xpose.msra.mxu0 0
  %237 = vmatprep.subr.bf16.mxu0 0
  %238 = vmatpush1.bf16.xpose.msra.mxu0 %v221
  %239 = vmatprep.subr.bf16.mxu0 0
  %240 = vmatpush2.bf16.xpose.msra.mxu0 0
  %241 = vmatprep.subr.bf16.mxu0 0
  %242 = vmatpush2.bf16.xpose.msra.mxu0 0
  %243 = vmatprep.subr.bf16.mxu0 0
  %244 = vmatpush2.bf16.xpose.msra.mxu0 0
  %245 = vmatprep.subr.bf16.mxu0 0
  %246 = vmatpush2.bf16.xpose.msra.mxu0 0
  %247 = vmatprep.subr.bf16.mxu0 0
  %248 = vmatpush2.bf16.xpose.msra.mxu0 0
  %249 = vmatprep.subr.bf16.mxu0 0
  %250 = vmatpush2.bf16.xpose.msra.mxu0 0
  %251 = vmatprep.subr.bf16.mxu0 0
  %252 = vmatpush2.bf16.xpose.msra.mxu0 0
  %253 = vmatprep.subr.bf16.mxu0 0
  %254 = vmatpush2.bf16.xpose.msra.mxu0 0
  %255 = vmatprep.mubr.bf16.mxu0 0
  %256 = vmatmul.mubr.bf16.gmra.mxu0 %v218
  %v257 = vpop.f32.mrf.mxu0
  %v258 = vadd.f32 %v164, %v257
  %v259 = vpop.f32.mrf.mxu0
  %v260 = vpop.f32.mrf.mxu0
  %v261 = vpop.f32.mrf.mxu0
  %262 = vdwg.mxu0
  %vm263 = vcmask 64512
  %v264 = vsel %vm263, %v210, -inf
  %265 = vmax.xlane.f32.xlu0 %v264
  %v266 = vpop.xlane.xlu0 %265
  %v267 = vsel %vm263, %v258, -inf
  %268 = vmax.xlane.f32.xlu0 %v267
  %v269 = vpop.xlane.xlu0 %268
  %v270 = vsub.f32 %v210, %v266
  %v271 = vsub.f32 %v258, %v269
  %v272 = vmul.f32 %v270, 1.442695
  %v273 = vpow.pop %v272
  %v274 = vmul.f32 %v271, 1.442695
  %v275 = vpow.pop %v274
  %v276 = vsel %vm263, %v273, 0.0
  %277 = vadd.xlane.f32.xlu0 %v276
  %v278 = vpop.xlane.xlu0 %277
  %v279 = vsel %vm263, %v275, 0.0
  %280 = vadd.xlane.f32.xlu0 %v279
  %v281 = vpop.xlane.xlu0 %280
  %v282 = vrcp.pop %v278
  %v283 = vrcp.pop %v281
  %v284 = vmul.f32 %v273, %v282
  %v285 = vmul.f32 %v275, %v283
  %v286 = vpack.c.bf16 %v284, %v284
  %v287 = vpack.c.bf16 %v285, %v285
  %288 = vrot.lane.b32.xlu0 %v151, 64
  %v289 = vpop.permute.xlu0 %288
  %v291 = vsel %vm263, %v286, 0
  %vm293 = vcmask 1043456
  %v295 = vsel %vm293, %v289, 0
  %297 = vmatprep.subr.bf16.mxu0 0
  %298 = vmatpush1.bf16.msra.mxu0 0
  %299 = vmatprep.subr.bf16.mxu0 0
  %300 = vmatpush1.bf16.msra.mxu0 0
  %301 = vmatprep.subr.bf16.mxu0 0
  %302 = vmatpush1.bf16.msra.mxu0 0
  %303 = vmatprep.subr.bf16.mxu0 0
  %304 = vmatpush1.bf16.msra.mxu0 0
  %305 = vmatprep.subr.bf16.mxu0 0
  %306 = vmatpush1.bf16.msra.mxu0 0
  %307 = vmatprep.subr.bf16.mxu0 0
  %308 = vmatpush1.bf16.msra.mxu0 0
  %309 = vmatprep.subr.bf16.mxu0 0
  %310 = vmatpush1.bf16.msra.mxu0 0
  %311 = vmatprep.subr.bf16.mxu0 0
  %312 = vmatpush1.bf16.msra.mxu0 %v295
  %313 = vmatprep.subr.bf16.mxu0 0
  %314 = vmatpush2.bf16.msra.mxu0 0
  %315 = vmatprep.subr.bf16.mxu0 0
  %316 = vmatpush2.bf16.msra.mxu0 0
  %317 = vmatprep.subr.bf16.mxu0 0
  %318 = vmatpush2.bf16.msra.mxu0 0
  %319 = vmatprep.subr.bf16.mxu0 0
  %320 = vmatpush2.bf16.msra.mxu0 0
  %321 = vmatprep.subr.bf16.mxu0 0
  %322 = vmatpush2.bf16.msra.mxu0 0
  %323 = vmatprep.subr.bf16.mxu0 0
  %324 = vmatpush2.bf16.msra.mxu0 0
  %325 = vmatprep.subr.bf16.mxu0 0
  %326 = vmatpush2.bf16.msra.mxu0 0
  %327 = vmatprep.subr.bf16.mxu0 0
  %328 = vmatpush2.bf16.msra.mxu0 0
  %329 = vmatprep.mubr.bf16.mxu0 0
  %330 = vmatmul.mubr.bf16.gmra.mxu0 %v291
  %v331 = vpop.f32.mrf.mxu0
  %v332 = vadd.f32 0.0, %v331
  %v333 = vpop.f32.mrf.mxu0
  %v334 = vpop.f32.mrf.mxu0
  %v335 = vpop.f32.mrf.mxu0
  %336 = vdwg.mxu0
  %337 = vrot.lane.b32.xlu0 %v152, 64
  %v338 = vpop.permute.xlu0 %337
  %v340 = vsel %vm263, %v287, 0
  %v343 = vsel %vm293, %v338, 0
  %345 = vmatprep.subr.bf16.mxu0 0
  %346 = vmatpush1.bf16.msra.mxu0 0
  %347 = vmatprep.subr.bf16.mxu0 0
  %348 = vmatpush1.bf16.msra.mxu0 0
  %349 = vmatprep.subr.bf16.mxu0 0
  %350 = vmatpush1.bf16.msra.mxu0 0
  %351 = vmatprep.subr.bf16.mxu0 0
  %352 = vmatpush1.bf16.msra.mxu0 0
  %353 = vmatprep.subr.bf16.mxu0 0
  %354 = vmatpush1.bf16.msra.mxu0 0
  %355 = vmatprep.subr.bf16.mxu0 0
  %356 = vmatpush1.bf16.msra.mxu0 0
  %357 = vmatprep.subr.bf16.mxu0 0
  %358 = vmatpush1.bf16.msra.mxu0 0
  %359 = vmatprep.subr.bf16.mxu0 0
  %360 = vmatpush1.bf16.msra.mxu0 %v343
  %361 = vmatprep.subr.bf16.mxu0 0
  %362 = vmatpush2.bf16.msra.mxu0 0
  %363 = vmatprep.subr.bf16.mxu0 0
  %364 = vmatpush2.bf16.msra.mxu0 0
  %365 = vmatprep.subr.bf16.mxu0 0
  %366 = vmatpush2.bf16.msra.mxu0 0
  %367 = vmatprep.subr.bf16.mxu0 0
  %368 = vmatpush2.bf16.msra.mxu0 0
  %369 = vmatprep.subr.bf16.mxu0 0
  %370 = vmatpush2.bf16.msra.mxu0 0
  %371 = vmatprep.subr.bf16.mxu0 0
  %372 = vmatpush2.bf16.msra.mxu0 0
  %373 = vmatprep.subr.bf16.mxu0 0
  %374 = vmatpush2.bf16.msra.mxu0 0
  %375 = vmatprep.subr.bf16.mxu0 0
  %376 = vmatpush2.bf16.msra.mxu0 0
  %377 = vmatprep.mubr.bf16.mxu0 0
  %378 = vmatmul.mubr.bf16.gmra.mxu0 %v340
  %v379 = vpop.f32.mrf.mxu0
  %v380 = vadd.f32 0.0, %v379
  %v381 = vpop.f32.mrf.mxu0
  %v382 = vpop.f32.mrf.mxu0
  %v383 = vpop.f32.mrf.mxu0
  %384 = vdwg.mxu0
  %v385 = vpack.c.bf16 %v380, %v332
  %v386 = vld [vmem:[%s4] sm:$0xf]
  %v387 = vld [vmem:[%s4 + $0x4] sm:$0xf]
  %v388 = vld [vmem:[%s4 + $0x8] sm:$0xf]
  %v389 = vld [vmem:[%s4 + $0xc] sm:$0xf]
  %v390 = vld [vmem:[%s5] sm:$0x1]
  %v392 = vlaneseq
  %v393 = vshrl.u32 %v392, 7
  %v394 = vsub.s32 0, %v393
  %v395 = vrot.slane %v390, %v394
  %v401 = vunpack.c.l.b16 %v386
  %v402 = vunpack.c.l.b16 %v387
  %v403 = vunpack.c.l.b16 %v388
  %v404 = vunpack.c.l.b16 %v389
  %v405 = vpack.c.b16 %v402, %v401
  %v406 = vpack.c.b16 %v404, %v403
  %v410 = vsel %vm102, %v385, 0
  %412 = vmatprep.subr.bf16.mxu0 0
  %413 = vmatpush1.bf16.msra.mxu0 0
  %414 = vmatprep.subr.bf16.mxu0 0
  %415 = vmatpush1.bf16.msra.mxu0 0
  %416 = vmatprep.subr.bf16.mxu0 0
  %417 = vmatpush1.bf16.msra.mxu0 0
  %418 = vmatprep.subr.bf16.mxu0 0
  %419 = vmatpush1.bf16.msra.mxu0 0
  %420 = vmatprep.subr.bf16.mxu0 0
  %421 = vmatpush1.bf16.msra.mxu0 0
  %422 = vmatprep.subr.bf16.mxu0 0
  %423 = vmatpush1.bf16.msra.mxu0 0
  %424 = vmatprep.subr.bf16.mxu0 0
  %425 = vmatpush1.bf16.msra.mxu0 %v406
  %426 = vmatprep.subr.bf16.mxu0 0
  %427 = vmatpush1.bf16.msra.mxu0 %v405
  %428 = vmatprep.subr.bf16.mxu0 0
  %429 = vmatpush2.bf16.msra.mxu0 0
  %430 = vmatprep.subr.bf16.mxu0 0
  %431 = vmatpush2.bf16.msra.mxu0 0
  %432 = vmatprep.subr.bf16.mxu0 0
  %433 = vmatpush2.bf16.msra.mxu0 0
  %434 = vmatprep.subr.bf16.mxu0 0
  %435 = vmatpush2.bf16.msra.mxu0 0
  %436 = vmatprep.subr.bf16.mxu0 0
  %437 = vmatpush2.bf16.msra.mxu0 0
  %438 = vmatprep.subr.bf16.mxu0 0
  %439 = vmatpush2.bf16.msra.mxu0 0
  %440 = vmatprep.subr.bf16.mxu0 0
  %441 = vmatpush2.bf16.msra.mxu0 0
  %442 = vmatprep.subr.bf16.mxu0 0
  %443 = vmatpush2.bf16.msra.mxu0 0
  %444 = vmatprep.mubr.bf16.mxu0 0
  %445 = vmatmul.mubr.bf16.gmra.mxu0 %v410
  %v446 = vpop.f32.mrf.mxu0
  %v447 = vadd.f32 %v395, %v446
  %v448 = vpop.f32.mrf.mxu0
  %v449 = vpop.f32.mrf.mxu0
  %v450 = vadd.f32 %v395, %v449
  %v451 = vpop.f32.mrf.mxu0
  %452 = vdwg.mxu0
  %v453 = vadd.f32 %v72, %v447
  %v454 = vadd.f32 %v73, %v450
  %v455 = vld [vmem:[%s6] sm:$0x1]
  %v456 = vld [vmem:[%s7] sm:$0x1]
  %v457 = vsel %vm102, %v453, 0.0
  %458 = vadd.xlane.f32.xlu0 %v457
  %v459 = vpop.xlane.xlu0 %458
  %v460 = vsel %vm102, %v454, 0.0
  %461 = vadd.xlane.f32.xlu0 %v460
  %v462 = vpop.xlane.xlu0 %461
  %v463 = vrcp.pop 32.0
  %v464 = vmul.f32 %v459, %v463
  %v465 = vmul.f32 %v462, %v463
  %v466 = vsub.f32 %v453, %v464
  %v467 = vsub.f32 %v454, %v465
  %v468 = vmul.f32 %v466, %v466
  %v469 = vmul.f32 %v467, %v467
  %v470 = vsel %vm102, %v468, 0.0
  %471 = vadd.xlane.f32.xlu0 %v470
  %v472 = vpop.xlane.xlu0 %471
  %v473 = vsel %vm102, %v469, 0.0
  %474 = vadd.xlane.f32.xlu0 %v473
  %v475 = vpop.xlane.xlu0 %474
  %v476 = vmul.f32 %v472, %v463
  %v477 = vmul.f32 %v475, %v463
  %v478 = vadd.f32 %v476, 1e-07
  %v479 = vadd.f32 %v477, 1e-07
  %v480 = vrsqrt.pop %v478
  %v481 = vrsqrt.pop %v479
  %v482 = vmul.f32 %v466, %v480
  %v483 = vmul.f32 %v467, %v481
  %v485 = vlaneseq
  %v486 = vshrl.u32 %v485, 7
  %v487 = vsub.s32 0, %v486
  %v488 = vrot.slane %v455, %v487
  %v490 = vmul.f32 %v482, %v488
  %v491 = vmul.f32 %v483, %v488
  %v493 = vlaneseq
  %v494 = vshrl.u32 %v493, 7
  %v495 = vsub.s32 0, %v494
  %v496 = vrot.slane %v456, %v495
  %v498 = vadd.f32 %v490, %v496
  %v499 = vadd.f32 %v491, %v496
  %v500 = vpack.c.bf16 %v499, %v498
  %501 = vst.msk [vmem:[#allocation2] sm:$0xff] %vm102, 0.0
  %502 = vst.msk [vmem:[#allocation2 + $0x8] sm:$0xff] %vm102, 0.0
  %v503 = vld [vmem:[%s8] sm:$0xf]
  %v504 = vld [vmem:[%s8 + $0x4] sm:$0xf]
  %v505 = vld [vmem:[%s8 + $0x8] sm:$0xf]
  %v506 = vld [vmem:[%s8 + $0xc] sm:$0xf]
  %v507 = vld [vmem:[%s9] sm:$0x1]
  %v509 = vlaneseq
  %v510 = vshrl.u32 %v509, 7
  %v511 = vsub.s32 0, %v510
  %v512 = vrot.slane %v507, %v511
  %v518 = vunpack.c.l.b16 %v503
  %v519 = vunpack.c.l.b16 %v504
  %v520 = vunpack.c.l.b16 %v505
  %v521 = vunpack.c.l.b16 %v506
  %v522 = vpack.c.b16 %v519, %v518
  %v523 = vpack.c.b16 %v521, %v520
  %v527 = vsel %vm102, %v500, 0
  %529 = vmatprep.subr.bf16.mxu0 0
  %530 = vmatpush1.bf16.msra.mxu0 0
  %531 = vmatprep.subr.bf16.mxu0 0
  %532 = vmatpush1.bf16.msra.mxu0 0
  %533 = vmatprep.subr.bf16.mxu0 0
  %534 = vmatpush1.bf16.msra.mxu0 0
  %535 = vmatprep.subr.bf16.mxu0 0
  %536 = vmatpush1.bf16.msra.mxu0 0
  %537 = vmatprep.subr.bf16.mxu0 0
  %538 = vmatpush1.bf16.msra.mxu0 0
  %539 = vmatprep.subr.bf16.mxu0 0
  %540 = vmatpush1.bf16.msra.mxu0 0
  %541 = vmatprep.subr.bf16.mxu0 0
  %542 = vmatpush1.bf16.msra.mxu0 %v523
  %543 = vmatprep.subr.bf16.mxu0 0
  %544 = vmatpush1.bf16.msra.mxu0 %v522
  %545 = vmatprep.subr.bf16.mxu0 0
  %546 = vmatpush2.bf16.msra.mxu0 0
  %547 = vmatprep.subr.bf16.mxu0 0
  %548 = vmatpush2.bf16.msra.mxu0 0
  %549 = vmatprep.subr.bf16.mxu0 0
  %550 = vmatpush2.bf16.msra.mxu0 0
  %551 = vmatprep.subr.bf16.mxu0 0
  %552 = vmatpush2.bf16.msra.mxu0 0
  %553 = vmatprep.subr.bf16.mxu0 0
  %554 = vmatpush2.bf16.msra.mxu0 0
  %555 = vmatprep.subr.bf16.mxu0 0
  %556 = vmatpush2.bf16.msra.mxu0 0
  %557 = vmatprep.subr.bf16.mxu0 0
  %558 = vmatpush2.bf16.msra.mxu0 0
  %559 = vmatprep.subr.bf16.mxu0 0
  %560 = vmatpush2.bf16.msra.mxu0 0
  %561 = vmatprep.mubr.bf16.mxu0 0
  %562 = vmatmul.mubr.bf16.gmra.mxu0 %v527
  %v563 = vpop.f32.mrf.mxu0
  %v564 = vadd.f32 %v512, %v563
  %v565 = vpop.f32.mrf.mxu0
  %v566 = vpop.f32.mrf.mxu0
  %v567 = vadd.f32 %v512, %v566
  %v568 = vpop.f32.mrf.mxu0
  %569 = vdwg.mxu0
  %v570 = vmul.f32 %v564, %v564
  %v571 = vmul.f32 %v567, %v567
  %v572 = vmul.f32 %v564, %v570
  %v573 = vmul.f32 %v567, %v571
  %v574 = vmul.f32 %v572, 0.044715
  %v575 = vmul.f32 %v573, 0.044715
  %v576 = vadd.f32 %v564, %v574
  %v577 = vadd.f32 %v567, %v575
  %v578 = vmul.f32 %v576, 0.7978846
  %v579 = vmul.f32 %v577, 0.7978846
  %v580 = vtanh.pop %v578
  %v581 = vtanh.pop %v579
  %v582 = vadd.f32 %v580, 1.0
  %v583 = vadd.f32 %v581, 1.0
  %v584 = vmul.f32 %v582, 0.5
  %v585 = vmul.f32 %v583, 0.5
  %v586 = vmul.f32 %v564, %v584
  %v587 = vmul.f32 %v567, %v585
  %v588 = vld [vmem:[#allocation2] sm:$0xff]
  %v589 = vld [vmem:[#allocation2 + $0x8] sm:$0xff]
  %v590 = vpack.c.bf16 %v587, %v586
  %v591 = vld [vmem:[%s10] sm:$0xf]
  %v592 = vld [vmem:[%s10 + $0x4] sm:$0xf]
  %v593 = vld [vmem:[%s10 + $0x8] sm:$0xf]
  %v594 = vld [vmem:[%s10 + $0xc] sm:$0xf]
  %v595 = vld [vmem:[%s10 + $0x10] sm:$0xf]
  %v596 = vld [vmem:[%s10 + $0x14] sm:$0xf]
  %v597 = vld [vmem:[%s10 + $0x18] sm:$0xf]
  %v598 = vld [vmem:[%s10 + $0x1c] sm:$0xf]
  %v599 = vld [vmem:[%s10 + $0x20] sm:$0xf]
  %v600 = vld [vmem:[%s10 + $0x24] sm:$0xf]
  %v601 = vld [vmem:[%s10 + $0x28] sm:$0xf]
  %v602 = vld [vmem:[%s10 + $0x2c] sm:$0xf]
  %v603 = vld [vmem:[%s10 + $0x30] sm:$0xf]
  %v604 = vld [vmem:[%s10 + $0x34] sm:$0xf]
  %v605 = vld [vmem:[%s10 + $0x38] sm:$0xf]
  %v606 = vld [vmem:[%s10 + $0x3c] sm:$0xf]
  %v623 = vunpack.c.l.b16 %v591
  %v624 = vunpack.c.l.b16 %v592
  %v625 = vunpack.c.l.b16 %v593
  %v626 = vunpack.c.l.b16 %v594
  %v627 = vunpack.c.l.b16 %v595
  %v628 = vunpack.c.l.b16 %v596
  %v629 = vunpack.c.l.b16 %v597
  %v630 = vunpack.c.l.b16 %v598
  %v631 = vunpack.c.l.b16 %v599
  %v632 = vunpack.c.l.b16 %v600
  %v633 = vunpack.c.l.b16 %v601
  %v634 = vunpack.c.l.b16 %v602
  %v635 = vunpack.c.l.b16 %v603
  %v636 = vunpack.c.l.b16 %v604
  %v637 = vunpack.c.l.b16 %v605
  %v638 = vunpack.c.l.b16 %v606
  %v639 = vpack.c.b16 %v624, %v623
  %v640 = vpack.c.b16 %v626, %v625
  %v641 = vpack.c.b16 %v628, %v627
  %v642 = vpack.c.b16 %v630, %v629
  %v643 = vpack.c.b16 %v632, %v631
  %v644 = vpack.c.b16 %v634, %v633
  %v645 = vpack.c.b16 %v636, %v635
  %v646 = vpack.c.b16 %v638, %v637
  %655 = vmatprep.subr.bf16.mxu0 0
  %656 = vmatpush1.bf16.msra.mxu0 %v646
  %657 = vmatprep.subr.bf16.mxu0 0
  %658 = vmatpush1.bf16.msra.mxu0 %v645
  %659 = vmatprep.subr.bf16.mxu0 0
  %660 = vmatpush1.bf16.msra.mxu0 %v644
  %661 = vmatprep.subr.bf16.mxu0 0
  %662 = vmatpush1.bf16.msra.mxu0 %v643
  %663 = vmatprep.subr.bf16.mxu0 0
  %664 = vmatpush1.bf16.msra.mxu0 %v642
  %665 = vmatprep.subr.bf16.mxu0 0
  %666 = vmatpush1.bf16.msra.mxu0 %v641
  %667 = vmatprep.subr.bf16.mxu0 0
  %668 = vmatpush1.bf16.msra.mxu0 %v640
  %669 = vmatprep.subr.bf16.mxu0 0
  %670 = vmatpush1.bf16.msra.mxu0 %v639
  %671 = vmatprep.subr.bf16.mxu0 0
  %672 = vmatpush2.bf16.msra.mxu0 0
  %673 = vmatprep.subr.bf16.mxu0 0
  %674 = vmatpush2.bf16.msra.mxu0 0
  %675 = vmatprep.subr.bf16.mxu0 0
  %676 = vmatpush2.bf16.msra.mxu0 0
  %677 = vmatprep.subr.bf16.mxu0 0
  %678 = vmatpush2.bf16.msra.mxu0 0
  %679 = vmatprep.subr.bf16.mxu0 0
  %680 = vmatpush2.bf16.msra.mxu0 0
  %681 = vmatprep.subr.bf16.mxu0 0
  %682 = vmatpush2.bf16.msra.mxu0 0
  %683 = vmatprep.subr.bf16.mxu0 0
  %684 = vmatpush2.bf16.msra.mxu0 0
  %685 = vmatprep.subr.bf16.mxu0 0
  %686 = vmatpush2.bf16.msra.mxu0 0
  %687 = vmatprep.mubr.bf16.mxu0 0
  %688 = vmatmul.mubr.bf16.gmra.mxu0 %v590
  %v689 = vpop.f32.mrf.mxu0
  %v690 = vadd.f32 0.0, %v689
  %v691 = vpop.f32.mrf.mxu0
  %v692 = vpop.f32.mrf.mxu0
  %v693 = vadd.f32 0.0, %v692
  %v694 = vpop.f32.mrf.mxu0
  %695 = vdwg.mxu0
  %v696 = vadd.f32 %v588, %v690
  %v697 = vadd.f32 %v589, %v693
  %698 = vst.msk [vmem:[#allocation2] sm:$0xff] %vm102, %v696
  %699 = vst.msk [vmem:[#allocation2 + $0x8] sm:$0xff] %vm102, %v697
  %v700 = vld [vmem:[#allocation2] sm:$0xff]
  %v701 = vld [vmem:[#allocation2 + $0x8] sm:$0xff]
  %v702 = vadd.f32 %v498, %v700
  %v703 = vadd.f32 %v499, %v701
  %v704 = vld [vmem:[%s11] sm:$0x1]
  %v706 = vlaneseq
  %v707 = vshrl.u32 %v706, 7
  %v708 = vsub.s32 0, %v707
  %v709 = vrot.slane %v704, %v708
  %v711 = vadd.f32 %v702, %v709
  %v712 = vadd.f32 %v703, %v709
  %v713 = vld [vmem:[%s12] sm:$0x1]
  %v714 = vld [vmem:[%s13] sm:$0x1]
  %v715 = vsel %vm102, %v711, 0.0
  %716 = vadd.xlane.f32.xlu0 %v715
  %v717 = vpop.xlane.xlu0 %716
  %v718 = vsel %vm102, %v712, 0.0
  %719 = vadd.xlane.f32.xlu0 %v718
  %v720 = vpop.xlane.xlu0 %719
  %v721 = vmul.f32 %v717, %v463
  %v722 = vmul.f32 %v720, %v463
  %v723 = vsub.f32 %v711, %v721
  %v724 = vsub.f32 %v712, %v722
  %v725 = vmul.f32 %v723, %v723
  %v726 = vmul.f32 %v724, %v724
  %v727 = vsel %vm102, %v725, 0.0
  %728 = vadd.xlane.f32.xlu0 %v727
  %v729 = vpop.xlane.xlu0 %728
  %v730 = vsel %vm102, %v726, 0.0
  %731 = vadd.xlane.f32.xlu0 %v730
  %v732 = vpop.xlane.xlu0 %731
  %v733 = vmul.f32 %v729, %v463
  %v734 = vmul.f32 %v732, %v463
  %v735 = vadd.f32 %v733, 1e-07
  %v736 = vadd.f32 %v734, 1e-07
  %v737 = vrsqrt.pop %v735
  %v738 = vrsqrt.pop %v736
  %v739 = vmul.f32 %v723, %v737
  %v740 = vmul.f32 %v724, %v738
  %v742 = vlaneseq
  %v743 = vshrl.u32 %v742, 7
  %v744 = vsub.s32 0, %v743
  %v745 = vrot.slane %v713, %v744
  %v747 = vmul.f32 %v739, %v745
  %v748 = vmul.f32 %v740, %v745
  %v750 = vlaneseq
  %v751 = vshrl.u32 %v750, 7
  %v752 = vsub.s32 0, %v751
  %v753 = vrot.slane %v714, %v752
  %v755 = vadd.f32 %v747, %v753
  %v756 = vadd.f32 %v748, %v753
  %v757 = vpack.c.bf16 %v756, %v755
  %v758 = vld [vmem:[%s14] sm:$0xf]
  %v759 = vld [vmem:[%s14 + $0x4] sm:$0xf]
  %v760 = vld [vmem:[%s14 + $0x8] sm:$0xf]
  %v761 = vld [vmem:[%s14 + $0xc] sm:$0xf]
  %v762 = vld [vmem:[%s15] sm:$0x1]
  %v764 = vlaneseq
  %v765 = vshrl.u32 %v764, 7
  %v766 = vsub.s32 0, %v765
  %v767 = vrot.slane %v762, %v766
  %v773 = vunpack.c.l.b16 %v758
  %v774 = vunpack.c.l.b16 %v759
  %v775 = vunpack.c.l.b16 %v760
  %v776 = vunpack.c.l.b16 %v761
  %v777 = vpack.c.b16 %v774, %v773
  %v778 = vpack.c.b16 %v776, %v775
  %v782 = vsel %vm102, %v757, 0
  %784 = vmatprep.subr.bf16.mxu0 0
  %785 = vmatpush1.bf16.msra.mxu0 0
  %786 = vmatprep.subr.bf16.mxu0 0
  %787 = vmatpush1.bf16.msra.mxu0 0
  %788 = vmatprep.subr.bf16.mxu0 0
  %789 = vmatpush1.bf16.msra.mxu0 0
  %790 = vmatprep.subr.bf16.mxu0 0
  %791 = vmatpush1.bf16.msra.mxu0 0
  %792 = vmatprep.subr.bf16.mxu0 0
  %793 = vmatpush1.bf16.msra.mxu0 0
  %794 = vmatprep.subr.bf16.mxu0 0
  %795 = vmatpush1.bf16.msra.mxu0 0
  %796 = vmatprep.subr.bf16.mxu0 0
  %797 = vmatpush1.bf16.msra.mxu0 %v778
  %798 = vmatprep.subr.bf16.mxu0 0
  %799 = vmatpush1.bf16.msra.mxu0 %v777
  %800 = vmatprep.subr.bf16.mxu0 0
  %801 = vmatpush2.bf16.msra.mxu0 0
  %802 = vmatprep.subr.bf16.mxu0 0
  %803 = vmatpush2.bf16.msra.mxu0 0
  %804 = vmatprep.subr.bf16.mxu0 0
  %805 = vmatpush2.bf16.msra.mxu0 0
  %806 = vmatprep.subr.bf16.mxu0 0
  %807 = vmatpush2.bf16.msra.mxu0 0
  %808 = vmatprep.subr.bf16.mxu0 0
  %809 = vmatpush2.bf16.msra.mxu0 0
  %810 = vmatprep.subr.bf16.mxu0 0
  %811 = vmatpush2.bf16.msra.mxu0 0
  %812 = vmatprep.subr.bf16.mxu0 0
  %813 = vmatpush2.bf16.msra.mxu0 0
  %814 = vmatprep.subr.bf16.mxu0 0
  %815 = vmatpush2.bf16.msra.mxu0 0
  %816 = vmatprep.mubr.bf16.mxu0 0
  %817 = vmatmul.mubr.bf16.gmra.mxu0 %v782
  %v818 = vpop.f32.mrf.mxu0
  %v819 = vadd.f32 %v767, %v818
  %v820 = vpop.f32.mrf.mxu0
  %v821 = vpop.f32.mrf.mxu0
  %v822 = vadd.f32 %v767, %v821
  %v823 = vpop.f32.mrf.mxu0
  %824 = vdwg.mxu0
  %v825 = vtanh.pop %v819
  %v826 = vtanh.pop %v822
  %v827 = vld [vmem:[%s16] sm:$0x1]
  %v829 = vlaneseq
  %v830 = vshrl.u32 %v829, 7
  %v831 = vsub.s32 0, %v830
  %v832 = vrot.slane %v827, %v831
  %v834 = vmul.f32 %v825, %v832
  %v835 = vmul.f32 %v826, %v832
  %v836 = vsel %vm102, %v834, 0.0
  %837 = vadd.xlane.f32.xlu0 %v836
  %v838 = vpop.xlane.xlu0 %837
  %v839 = vsel %vm102, %v835, 0.0
  %840 = vadd.xlane.f32.xlu0 %v839
  %v841 = vpop.xlane.xlu0 %840
  %v842 = vld [vmem:[#allocation3] sm:$0x1]
  %v844 = vlaneseq
  %v845 = vshrl.u32 %v844, 7
  %v846 = vsub.s32 0, %v845
  %v847 = vrot.slane %v842, %v846
  %v849 = vadd.f32 %v838, %v847
  %v850 = vadd.f32 %v841, %v847
  %vm851 = vcmask 7168
  %v852 = vsel %vm851, %v849, -inf
  %v853 = vrot.slane %v852, 4
  %v854 = vmax.f32 %v852, %v853
  %v855 = vrot.slane %v854, 2
  %v856 = vmax.f32 %v854, %v855
  %v857 = vrot.slane %v856, 1
  %v858 = vmax.f32 %v856, %v857
  %v859 = vsel %vm851, %v850, -inf
  %v860 = vrot.slane %v859, 4
  %v861 = vmax.f32 %v859, %v860
  %v862 = vrot.slane %v861, 2
  %v863 = vmax.f32 %v861, %v862
  %v864 = vrot.slane %v863, 1
  %v865 = vmax.f32 %v863, %v864
  %v866 = vsub.f32 %v849, %v858
  %v867 = vsub.f32 %v850, %v865
  %v868 = vmul.f32 %v866, 1.442695
  %v869 = vpow.pop %v868
  %v870 = vmul.f32 %v867, 1.442695
  %v871 = vpow.pop %v870
  %v872 = vsel %vm851, %v869, 0.0
  %v873 = vrot.slane %v872, 4
  %v874 = vadd.f32 %v872, %v873
  %v875 = vrot.slane %v874, 2
  %v876 = vadd.f32 %v874, %v875
  %v877 = vrot.slane %v876, 1
  %v878 = vadd.f32 %v876, %v877
  %v879 = vsel %vm851, %v871, 0.0
  %v880 = vrot.slane %v879, 4
  %v881 = vadd.f32 %v879, %v880
  %v882 = vrot.slane %v881, 2
  %v883 = vadd.f32 %v881, %v882
  %v884 = vrot.slane %v883, 1
  %v885 = vadd.f32 %v883, %v884
  %v886 = vrcp.pop %v878
  %v887 = vmul.f32 %v869, %v886
  %v888 = vrcp.pop %v885
  %v889 = vmul.f32 %v871, %v888
  %891 = vset.pattern.permute.xlu0 0
  %892 = vperm.xlu0 %891, %v887
  %v893 = vpop.permute.xlu0 %892
  %896 = vset.pattern.permute.xlu0 0
  %897 = vperm.xlu0 %896, %v889
  %v898 = vpop.permute.xlu0 %897
  %v900 = vmul.f32 %v893, %v755
  %v901 = vmul.f32 %v898, %v756
  %v902 = vsel %vm102, %v900, 0.0
  %v903 = vrot.slane %v902, 4
  %v904 = vadd.f32 %v902, %v903
  %v905 = vrot.slane %v904, 2
  %v906 = vadd.f32 %v904, %v905
  %v907 = vrot.slane %v906, 1
  %v908 = vadd.f32 %v906, %v907
  %v909 = vsel %vm102, %v901, 0.0
  %v910 = vrot.slane %v909, 4
  %v911 = vadd.f32 %v909, %v910
  %v912 = vrot.slane %v911, 2
  %v913 = vadd.f32 %v911, %v912
  %v914 = vrot.slane %v913, 1
  %v915 = vadd.f32 %v913, %v914
  %v916 = vld [vmem:[%s18] sm:$0x1]
  %v918 = vlaneseq
  %v919 = vshrl.u32 %v918, 7
  %v920 = vsub.s32 0, %v919
  %v921 = vrot.slane %v916, %v920
  %v923 = vmul.f32 %v908, %v921
  %v924 = vmul.f32 %v915, %v921
  %v927 = vrot.slane %v924, 7
  %vm928 = vcmask 1041409
  %v929 = vsel %vm928, %v927, %v923
  %vm931 = vcmask 254976
  %v932 = vsel %vm931, %v929, 0.0
  %933 = vadd.xlane.f32.xlu0 %v932
  %v934 = vpop.xlane.xlu0 %933
  %v935 = vld [vmem:[#allocation4] sm:$0x1]
  %v937 = vlaneseq
  %v938 = vshrl.u32 %v937, 7
  %v939 = vsub.s32 0, %v938
  %v940 = vrot.slane %v935, %v939
  %v942 = vadd.f32 %v934, %v940
  %vm943 = vcmask 1024
  %944 = vst.msk [vmem:[%s20] sm:$0x3] %vm943, %v942
  // Predicated region
  $region82: #{forward.1} parent=0 // pred_check
    _
  $region83: #{forward.1} parent=0 // pred_check_branch
    %946 = sbr.rel (0) target = $region85
  $region84: #{forward.1} parent=0 // pred_region
    _
  $region85: #{forward.1} parent=0 // pred_fallthru
    _
  // Predicated region
  $region86: #{forward.1} parent=0 // pred_check
    _
  $region87: #{forward.1} parent=0 // pred_check_branch
    %948 = sbr.rel (0) target = $region89
  $region88: #{forward.1} parent=0 // pred_region
    _
  $region89: #{forward.1} parent=0 // pred_fallthru
    _

</llo_original>
